<compile_context>
chip_gen: v7x
topology: tpu7x:2x2x1
jax: 0.10.0
libtpu: 0.0.40
codegen_flags: <defaults>
</compile_context>

<pallas_src>
import functools
import math

import jax
import jax.numpy as jnp
from jax.experimental import pallas as pl
from jax.experimental.pallas import tpu as pltpu


# ----------------------------- Pallas kernels ------------------------------

def _layernorm(x, g, b, eps):
    mean = jnp.mean(x, axis=-1, keepdims=True)
    var = jnp.mean(jnp.square(x - mean), axis=-1, keepdims=True)
    return (x - mean) * jax.lax.rsqrt(var + eps) * g + b


def _encoder_kernel(h_ref, mask_ref, embg_ref, embb_ref,
                    wqkv_ref, bqkv_ref, wo_ref, bo_ref,
                    ln1g_ref, ln1b_ref, w1_ref, b1_ref, w2_ref, b2_ref,
                    ln2g_ref, ln2b_ref,
                    o_ref, carry_ref, *, n_heads, eps):
    """One (batch element, layer) step of the BERT encoder.

    grid = (B, L): batch is 'parallel', layer is 'arbitrary'.  The hidden
    state for this batch element lives in `carry_ref` (VMEM) across the whole
    layer axis; the HBM output is written only at the last layer.
    """
    l = pl.program_id(1)
    S, H = carry_ref.shape
    dh = H // n_heads

    # Layer 0: apply the embedding LayerNorm once and seed the VMEM carry.
    @pl.when(l == 0)
    def _():
        carry_ref[...] = _layernorm(h_ref[0], embg_ref[...], embb_ref[...], eps)

    h = carry_ref[...]                                    # (S, H) float32
    hb = h.astype(jnp.bfloat16)

    # ---- fused Q/K/V projection: one bf16 MXU matmul, f32 accumulation ----
    qkv = jnp.dot(hb, wqkv_ref[0],
                  preferred_element_type=jnp.float32) + bqkv_ref[0]   # (S, 3H)

    def heads(x2d):                                       # (S, H) -> (N, S, dh)
        return jnp.transpose(x2d.reshape(S, n_heads, dh), (1, 0, 2))

    # 1/sqrt(dh) is already folded into the Q columns of wqkv.
    q = heads(qkv[:, 0:H]).astype(jnp.bfloat16)
    k = heads(qkv[:, H:2 * H]).astype(jnp.bfloat16)
    v = heads(qkv[:, 2 * H:3 * H]).astype(jnp.bfloat16)

    # ---- all heads in one batched matmul ----
    s = jnp.einsum('nqd,nkd->nqk', q, k,
                   preferred_element_type=jnp.float32) + mask_ref[...]   # (N,S,S)
    s = s - jnp.max(s, axis=-1, keepdims=True)
    p = jnp.exp(s)
    p = p * pl.reciprocal(jnp.sum(p, axis=-1, keepdims=True), approx=True)
    ctx = jnp.einsum('nqk,nkd->nqd', p.astype(jnp.bfloat16), v,
                     preferred_element_type=jnp.float32)                 # (N,S,dh)
    ctx = jnp.transpose(ctx, (1, 0, 2)).reshape(S, H)     # lane-dense (S, H)

    # ---- output projection + residual + LayerNorm ----
    attn = jnp.dot(ctx.astype(jnp.bfloat16), wo_ref[0],
                   preferred_element_type=jnp.float32) + bo_ref[0]
    h1 = _layernorm(attn + h, ln1g_ref[0], ln1b_ref[0], eps)

    # ---- FFN (GELU) + residual + LayerNorm ----
    f = jnp.dot(h1.astype(jnp.bfloat16), w1_ref[0],
                preferred_element_type=jnp.float32) + b1_ref[0]
    # TODO(synk): HF BERT default is exact erf-GELU; tanh approximation used here.
    c0 = math.sqrt(2.0 / math.pi)
    f = 0.5 * f * (1.0 + jnp.tanh(c0 * (f + 0.044715 * f * f * f)))
    f2 = jnp.dot(f.astype(jnp.bfloat16), w2_ref[0],
                 preferred_element_type=jnp.float32) + b2_ref[0]
    new_h = _layernorm(f2 + h1, ln2g_ref[0], ln2b_ref[0], eps)

    carry_ref[...] = new_h

    @pl.when(l == pl.num_programs(1) - 1)
    def _():
        o_ref[0] = new_h


def _pool_clf_kernel(cls_ref, pw_ref, pb_ref, cw_ref, cb_ref, o_ref):
    pooled = jnp.tanh(
        jnp.dot(cls_ref[...].astype(jnp.bfloat16), pw_ref[...],
                preferred_element_type=jnp.float32) + pb_ref[...])
    o_ref[...] = jnp.dot(pooled.astype(jnp.bfloat16), cw_ref[...],
                         preferred_element_type=jnp.float32) + cb_ref[...]


# ------------------------------- wrappers -----------------------------------

def encoder_stack(h_emb, add_mask, emb_g, emb_b, stacked, *, n_heads, eps=1e-12):
    """Runs all encoder layers in a single pallas_call, grid = (B, L)."""
    B, S, H = h_emb.shape
    L = stacked["wqkv"].shape[0]

    def _batch3(d0, d1):      # indexed by the batch grid axis
        return pl.BlockSpec((1, d0, d1), lambda b, l: (b, 0, 0))

    def _shared2(d0, d1):     # constant across the whole grid
        return pl.BlockSpec((d0, d1), lambda b, l: (0, 0))

    def _layer3(arr):         # stacked per-layer weights, indexed by layer axis
        _, d0, d1 = arr.shape
        return pl.BlockSpec((1, d0, d1), lambda b, l: (l, 0, 0))

    w_names = ["wqkv", "bqkv", "wo", "bo", "ln1_g", "ln1_b",
               "w1", "b1", "w2", "b2", "ln2_g", "ln2_b"]

    in_specs = [_batch3(S, H),                      # embeddings (after sum)
                _batch3(1, S),                      # additive attention mask
                _shared2(1, H), _shared2(1, H)]     # embedding LN gamma / beta
    in_specs += [_layer3(stacked[n]) for n in w_names]

    kernel = functools.partial(_encoder_kernel, n_heads=n_heads, eps=eps)
    return pl.pallas_call(
        kernel,
        grid_spec=pltpu.PrefetchScalarGridSpec(
            num_scalar_prefetch=0,
            grid=(B, L),
            in_specs=in_specs,
            out_specs=_batch3(S, H),
            scratch_shapes=[pltpu.VMEM((S, H), jnp.float32)],   # hidden carry
        ),
        out_shape=jax.ShapeDtypeStruct((B, S, H), jnp.float32),
        input_output_aliases={0: 0},     # update the hidden-state buffer in place
        compiler_params=pltpu.CompilerParams(
            dimension_semantics=("parallel", "arbitrary"),
            vmem_limit_bytes=32 * 1024 * 1024),
    )(h_emb, add_mask, emb_g, emb_b, *[stacked[n] for n in w_names])


def _full_spec(shape):
    return pl.BlockSpec(shape, lambda i, _s=shape: (0,) * len(_s))


def pool_classify(cls, pw, pb, cw, cb):
    B, H = cls.shape
    C = cw.shape[1]
    return pl.pallas_call(
        _pool_clf_kernel,
        grid=(1,),
        in_specs=[_full_spec((B, H)), _full_spec((H, H)), _full_spec((1, H)),
                  _full_spec((H, C)), _full_spec((1, C))],
        out_specs=_full_spec((B, C)),
        out_shape=jax.ShapeDtypeStruct((B, C), jnp.float32),
        compiler_params=pltpu.CompilerParams(
            dimension_semantics=("arbitrary",),
            vmem_limit_bytes=8 * 1024 * 1024),
    )(cls, pw, pb, cw, cb)


# ------------------------- params & forward (glue) --------------------------

VOCAB, MAX_POS, HIDDEN, N_HEADS, INTER, N_LAYERS = 100, 16, 32, 2, 64, 2


def init_params(key):
    kiter = iter(jax.random.split(key, 64))

    def nrm(shape):
        return 0.02 * jax.random.normal(next(kiter), shape, jnp.float32)

    scale = 1.0 / math.sqrt(HIDDEN // N_HEADS)

    def layer_params():
        # 1/sqrt(head_dim) folded into the Q projection at init.
        wq = nrm((HIDDEN, HIDDEN)) * scale
        wk, wv = nrm((HIDDEN, HIDDEN)), nrm((HIDDEN, HIDDEN))
        bq = jnp.zeros((HIDDEN,), jnp.float32) * scale
        bk = bv = jnp.zeros((HIDDEN,), jnp.float32)
        return dict(
            wqkv=jnp.concatenate([wq, wk, wv], axis=1).astype(jnp.bfloat16),
            bqkv=jnp.concatenate([bq, bk, bv]).reshape(1, 3 * HIDDEN),
            wo=nrm((HIDDEN, HIDDEN)).astype(jnp.bfloat16),
            bo=jnp.zeros((1, HIDDEN), jnp.float32),
            ln1_g=jnp.ones((1, HIDDEN), jnp.float32),
            ln1_b=jnp.zeros((1, HIDDEN), jnp.float32),
            w1=nrm((HIDDEN, INTER)).astype(jnp.bfloat16),
            b1=jnp.zeros((1, INTER), jnp.float32),
            w2=nrm((INTER, HIDDEN)).astype(jnp.bfloat16),
            b2=jnp.zeros((1, HIDDEN), jnp.float32),
            ln2_g=jnp.ones((1, HIDDEN), jnp.float32),
            ln2_b=jnp.zeros((1, HIDDEN), jnp.float32),
        )

    layers = [layer_params() for _ in range(N_LAYERS)]
    stacked = {k: jnp.stack([lyr[k] for lyr in layers]) for k in layers[0]}

    return dict(
        word_emb=nrm((VOCAB, HIDDEN)),
        pos_emb=nrm((MAX_POS, HIDDEN)),
        type_emb=nrm((2, HIDDEN)),
        emb_ln_g=jnp.ones((1, HIDDEN), jnp.float32),
        emb_ln_b=jnp.zeros((1, HIDDEN), jnp.float32),
        layers=stacked,
        pool_w=nrm((HIDDEN, HIDDEN)).astype(jnp.bfloat16),
        pool_b=jnp.zeros((1, HIDDEN), jnp.float32),
        clf_w=nrm((HIDDEN, 2)).astype(jnp.bfloat16),
        clf_b=jnp.zeros((1, 2), jnp.float32),
    )


def bert_forward(params, input_ids, attention_mask):
    B, S = input_ids.shape

    # Embedding gather stays in plain JAX (glue).
    # TODO(synk): token_type_ids fixed to 0 (matches the synthetic backbone).
    emb = (params["word_emb"][input_ids]
           + params["pos_emb"][:S][None, :, :]
           + params["type_emb"][0][None, None, :])                # (B, S, H)

    # Additive mask pre-broadcast once: (B, 1, S).
    add_mask = ((attention_mask.astype(jnp.float32) - 1.0) * 1e9).reshape(B, 1, S)

    h = encoder_stack(emb, add_mask,
                      params["emb_ln_g"], params["emb_ln_b"],
                      params["layers"], n_heads=N_HEADS)          # (B, S, H)

    cls = h[:, 0, :]                                              # (B, H), glue
    logits = pool_classify(cls, params["pool_w"], params["pool_b"],
                           params["clf_w"], params["clf_b"])      # (B, 2)
    return logits


if __name__ == "__main__":
    key = jax.random.PRNGKey(0)
    params = init_params(key)

    B, S = 2, 8
    input_ids = jax.random.randint(jax.random.fold_in(key, 123),
                                   (B, S), 0, VOCAB, dtype=jnp.int32)
    attention_mask = jnp.array([[1, 1, 1, 1, 1, 1, 1, 1],
                                [1, 1, 1, 1, 1, 0, 0, 0]], dtype=jnp.int32)

    fwd = jax.jit(lambda ids, m: bert_forward(params, ids, m))
    logits = fwd(input_ids, attention_mask)
    jax.block_until_ready(logits)
    assert logits.shape == (B, 2) and logits.dtype == jnp.float32
    print("KERNEL_OK")
</pallas_src>

<mosaic_0001>
module attributes {stable_mosaic.version = 11 : i64} {
  func.func @_pool_clf_kernel(%arg0: i32, %arg1: memref<2x32xf32, #tpu.memory_space<vmem>>, %arg2: memref<32x32xbf16, #tpu.memory_space<vmem>>, %arg3: memref<1x32xf32, #tpu.memory_space<vmem>>, %arg4: memref<32x2xbf16, #tpu.memory_space<vmem>>, %arg5: memref<1x2xf32, #tpu.memory_space<vmem>>, %arg6: memref<2x2xf32, #tpu.memory_space<vmem>>) attributes {dimension_semantics = [#tpu.dimension_semantics<arbitrary>], iteration_bounds = array<i64: 1>, scalar_prefetch = 0 : i64, scratch_operands = 0 : i64, tpu.core_type = #tpu.core_type<tc>, window_params = [{pipeline_mode = #tpu.pipeline_mode<synchronous>, transform_indices = @transform_0, window_bounds = array<i64: 2, 32>}, {pipeline_mode = #tpu.pipeline_mode<synchronous>, transform_indices = @transform_1, window_bounds = array<i64: 32, 32>}, {pipeline_mode = #tpu.pipeline_mode<synchronous>, transform_indices = @transform_2, window_bounds = array<i64: 1, 32>}, {pipeline_mode = #tpu.pipeline_mode<synchronous>, transform_indices = @transform_3, window_bounds = array<i64: 32, 2>}, {pipeline_mode = #tpu.pipeline_mode<synchronous>, transform_indices = @transform_4, window_bounds = array<i64: 1, 2>}, {pipeline_mode = #tpu.pipeline_mode<synchronous>, transform_indices = @transform_5, window_bounds = array<i64: 2, 2>}]} {
    %c0 = arith.constant 0 : index
    %c0_0 = arith.constant 0 : index
    %0 = vector.load %arg1[%c0, %c0_0] : memref<2x32xf32, #tpu.memory_space<vmem>>, vector<2x32xf32>
    %1 = arith.truncf %0 : vector<2x32xf32> to vector<2x32xbf16>
    %c0_1 = arith.constant 0 : index
    %c0_2 = arith.constant 0 : index
    %2 = vector.load %arg2[%c0_1, %c0_2] : memref<32x32xbf16, #tpu.memory_space<vmem>>, vector<32x32xbf16>
    %cst = arith.constant dense<0.000000e+00> : vector<2x32xf32>
    %3 = tpu.matmul %1, %2, %cst {dimension_numbers = #tpu.dot_dimension_numbers<[1], [0], [0], [1], [0, 0, 1, 1], [], []>} : vector<2x32xbf16>, vector<32x32xbf16>, vector<2x32xf32> -> vector<2x32xf32>
    %c0_3 = arith.constant 0 : index
    %c0_4 = arith.constant 0 : index
    %4 = vector.load %arg3[%c0_3, %c0_4] : memref<1x32xf32, #tpu.memory_space<vmem>>, vector<1x32xf32>
    %5 = vector.broadcast %4 : vector<1x32xf32> to vector<2x32xf32>
    %6 = arith.addf %3, %5 : vector<2x32xf32>
    %7 = math.tanh %6 : vector<2x32xf32>
    %8 = arith.truncf %7 : vector<2x32xf32> to vector<2x32xbf16>
    %c0_5 = arith.constant 0 : index
    %c0_6 = arith.constant 0 : index
    %9 = vector.load %arg4[%c0_5, %c0_6] : memref<32x2xbf16, #tpu.memory_space<vmem>>, vector<32x2xbf16>
    %cst_7 = arith.constant dense<0.000000e+00> : vector<2x2xf32>
    %10 = tpu.matmul %8, %9, %cst_7 {dimension_numbers = #tpu.dot_dimension_numbers<[1], [0], [0], [1], [0, 0, 1, 1], [], []>} : vector<2x32xbf16>, vector<32x2xbf16>, vector<2x2xf32> -> vector<2x2xf32>
    %c0_8 = arith.constant 0 : index
    %c0_9 = arith.constant 0 : index
    %11 = vector.load %arg5[%c0_8, %c0_9] : memref<1x2xf32, #tpu.memory_space<vmem>>, vector<1x2xf32>
    %12 = vector.broadcast %11 : vector<1x2xf32> to vector<2x2xf32>
    %13 = arith.addf %10, %12 : vector<2x2xf32>
    %c0_10 = arith.constant 0 : index
    %c0_11 = arith.constant 0 : index
    %14 = vector.load %arg6[%c0_10, %c0_11] : memref<2x2xf32, #tpu.memory_space<vmem>>, vector<2x2xf32>
    tpu.vector_store %arg6[%c0_10, %c0_11], %13 {strides = array<i32>} : memref<2x2xf32, #tpu.memory_space<vmem>>, vector<2x2xf32>,
    return
  }
  func.func @transform_0(%arg0: i32) -> (i32, i32) {
    %c0_i32 = arith.constant 0 : i32
    %c0_i32_0 = arith.constant 0 : i32
    %c0_i32_1 = arith.constant 0 : i32
    return %c0_i32, %c0_i32_0 : i32, i32
  }
  func.func @transform_1(%arg0: i32) -> (i32, i32) {
    %c0_i32 = arith.constant 0 : i32
    %c0_i32_0 = arith.constant 0 : i32
    %c0_i32_1 = arith.constant 0 : i32
    return %c0_i32, %c0_i32_0 : i32, i32
  }
  func.func @transform_2(%arg0: i32) -> (i32, i32) {
    %c0_i32 = arith.constant 0 : i32
    %c0_i32_0 = arith.constant 0 : i32
    %c0_i32_1 = arith.constant 0 : i32
    return %c0_i32, %c0_i32_0 : i32, i32
  }
  func.func @transform_3(%arg0: i32) -> (i32, i32) {
    %c0_i32 = arith.constant 0 : i32
    %c0_i32_0 = arith.constant 0 : i32
    %c0_i32_1 = arith.constant 0 : i32
    return %c0_i32, %c0_i32_0 : i32, i32
  }
  func.func @transform_4(%arg0: i32) -> (i32, i32) {
    %c0_i32 = arith.constant 0 : i32
    %c0_i32_0 = arith.constant 0 : i32
    %c0_i32_1 = arith.constant 0 : i32
    return %c0_i32, %c0_i32_0 : i32, i32
  }
  func.func @transform_5(%arg0: i32) -> (i32, i32) {
    %c0_i32 = arith.constant 0 : i32
    %c0_i32_0 = arith.constant 0 : i32
    %c0_i32_1 = arith.constant 0 : i32
    return %c0_i32, %c0_i32_0 : i32, i32
  }
}

module attributes {stable_mosaic.version = 11 : i64} {
  func.func @_encoder_kernel(%arg0: i32, %arg1: i32, %arg2: memref<1x8x32xf32, #tpu.memory_space<vmem>>, %arg3: memref<1x1x8xf32, #tpu.memory_space<vmem>>, %arg4: memref<1x32xf32, #tpu.memory_space<vmem>>, %arg5: memref<1x32xf32, #tpu.memory_space<vmem>>, %arg6: memref<1x32x96xbf16, #tpu.memory_space<vmem>>, %arg7: memref<1x1x96xf32, #tpu.memory_space<vmem>>, %arg8: memref<1x32x32xbf16, #tpu.memory_space<vmem>>, %arg9: memref<1x1x32xf32, #tpu.memory_space<vmem>>, %arg10: memref<1x1x32xf32, #tpu.memory_space<vmem>>, %arg11: memref<1x1x32xf32, #tpu.memory_space<vmem>>, %arg12: memref<1x32x64xbf16, #tpu.memory_space<vmem>>, %arg13: memref<1x1x64xf32, #tpu.memory_space<vmem>>, %arg14: memref<1x64x32xbf16, #tpu.memory_space<vmem>>, %arg15: memref<1x1x32xf32, #tpu.memory_space<vmem>>, %arg16: memref<1x1x32xf32, #tpu.memory_space<vmem>>, %arg17: memref<1x1x32xf32, #tpu.memory_space<vmem>>, %arg18: memref<1x8x32xf32, #tpu.memory_space<vmem>>, %arg19: memref<8x32xf32, #tpu.memory_space<vmem>>) attributes {dimension_semantics = [#tpu.dimension_semantics<parallel>, #tpu.dimension_semantics<arbitrary>], iteration_bounds = array<i64: 2, 2>, scalar_prefetch = 0 : i64, scratch_operands = 1 : i64, tpu.core_type = #tpu.core_type<tc>, window_params = [{transform_indices = @transform_0, window_bounds = array<i64: 1, 8, 32>}, {transform_indices = @transform_1, window_bounds = array<i64: 1, 1, 8>}, {pipeline_mode = #tpu.pipeline_mode<synchronous>, transform_indices = @transform_2, window_bounds = array<i64: 1, 32>}, {pipeline_mode = #tpu.pipeline_mode<synchronous>, transform_indices = @transform_3, window_bounds = array<i64: 1, 32>}, {transform_indices = @transform_4, window_bounds = array<i64: 1, 32, 96>}, {transform_indices = @transform_5, window_bounds = array<i64: 1, 1, 96>}, {transform_indices = @transform_6, window_bounds = array<i64: 1, 32, 32>}, {transform_indices = @transform_7, window_bounds = array<i64: 1, 1, 32>}, {transform_indices = @transform_8, window_bounds = array<i64: 1, 1, 32>}, {transform_indices = @transform_9, window_bounds = array<i64: 1, 1, 32>}, {transform_indices = @transform_10, window_bounds = array<i64: 1, 32, 64>}, {transform_indices = @transform_11, window_bounds = array<i64: 1, 1, 64>}, {transform_indices = @transform_12, window_bounds = array<i64: 1, 64, 32>}, {transform_indices = @transform_13, window_bounds = array<i64: 1, 1, 32>}, {transform_indices = @transform_14, window_bounds = array<i64: 1, 1, 32>}, {transform_indices = @transform_15, window_bounds = array<i64: 1, 1, 32>}, {transform_indices = @transform_16, window_bounds = array<i64: 1, 8, 32>}]} {
    %c0_i32 = arith.constant 0 : i32
    %0 = arith.cmpi eq, %arg1, %c0_i32 : i32
    %1 = arith.extui %0 : i1 to i32
    %c0_i32_0 = arith.constant 0 : i32
    %2 = arith.cmpi ne, %1, %c0_i32_0 : i32
    scf.if %2 {
      %c0_65 = arith.constant 0 : index
      %c0_66 = arith.constant 0 : index
      %c0_67 = arith.constant 0 : index
      %137 = vector.load %arg2[%c0_65, %c0_66, %c0_67] : memref<1x8x32xf32, #tpu.memory_space<vmem>>, vector<1x8x32xf32>
      %138 = vector.shape_cast %137 : vector<1x8x32xf32> to vector<8x32xf32>
      %c0_68 = arith.constant 0 : index
      %c0_69 = arith.constant 0 : index
      %139 = vector.load %arg4[%c0_68, %c0_69] : memref<1x32xf32, #tpu.memory_space<vmem>>, vector<1x32xf32>
      %c0_70 = arith.constant 0 : index
      %c0_71 = arith.constant 0 : index
      %140 = vector.load %arg5[%c0_70, %c0_71] : memref<1x32xf32, #tpu.memory_space<vmem>>, vector<1x32xf32>
      %cst_72 = arith.constant dense<0.000000e+00> : vector<8xf32>
      %141 = vector.multi_reduction <add>, %138, %cst_72 [1] : vector<8x32xf32> to vector<8xf32>
      %142 = vector.shape_cast %141 : vector<8xf32> to vector<8x1xf32>
      %cst_73 = arith.constant 3.200000e+01 : f32
      %143 = vector.broadcast %cst_73 : f32 to vector<8x1xf32>
      %144 = arith.divf %142, %143 : vector<8x1xf32>
      %145 = vector.broadcast %144 : vector<8x1xf32> to vector<8x32xf32>
      %146 = arith.subf %138, %145 : vector<8x32xf32>
      %147 = arith.mulf %146, %146 : vector<8x32xf32>
      %cst_74 = arith.constant dense<0.000000e+00> : vector<8xf32>
      %148 = vector.multi_reduction <add>, %147, %cst_74 [1] : vector<8x32xf32> to vector<8xf32>
      %149 = vector.shape_cast %148 : vector<8xf32> to vector<8x1xf32>
      %cst_75 = arith.constant 3.200000e+01 : f32
      %150 = vector.broadcast %cst_75 : f32 to vector<8x1xf32>
      %151 = arith.divf %149, %150 : vector<8x1xf32>
      %152 = vector.broadcast %144 : vector<8x1xf32> to vector<8x32xf32>
      %153 = arith.subf %138, %152 : vector<8x32xf32>
      %cst_76 = arith.constant 9.99999996E-13 : f32
      %154 = vector.broadcast %cst_76 : f32 to vector<8x1xf32>
      %155 = arith.addf %151, %154 : vector<8x1xf32>
      %156 = math.rsqrt %155 : vector<8x1xf32>
      %157 = vector.broadcast %156 : vector<8x1xf32> to vector<8x32xf32>
      %158 = arith.mulf %153, %157 : vector<8x32xf32>
      %159 = vector.broadcast %139 : vector<1x32xf32> to vector<8x32xf32>
      %160 = arith.mulf %158, %159 : vector<8x32xf32>
      %161 = vector.broadcast %140 : vector<1x32xf32> to vector<8x32xf32>
      %162 = arith.addf %160, %161 : vector<8x32xf32>
      %c0_77 = arith.constant 0 : index
      %c0_78 = arith.constant 0 : index
      %163 = vector.load %arg19[%c0_77, %c0_78] : memref<8x32xf32, #tpu.memory_space<vmem>>, vector<8x32xf32>
      tpu.vector_store %arg19[%c0_77, %c0_78], %162 {strides = array<i32>} : memref<8x32xf32, #tpu.memory_space<vmem>>, vector<8x32xf32>,
    } else {
    }
    %c0 = arith.constant 0 : index
    %c0_1 = arith.constant 0 : index
    %3 = vector.load %arg19[%c0, %c0_1] : memref<8x32xf32, #tpu.memory_space<vmem>>, vector<8x32xf32>
    %4 = arith.truncf %3 : vector<8x32xf32> to vector<8x32xbf16>
    %c0_2 = arith.constant 0 : index
    %c0_3 = arith.constant 0 : index
    %c0_4 = arith.constant 0 : index
    %5 = vector.load %arg6[%c0_2, %c0_3, %c0_4] : memref<1x32x96xbf16, #tpu.memory_space<vmem>>, vector<1x32x96xbf16>
    %6 = vector.shape_cast %5 : vector<1x32x96xbf16> to vector<32x96xbf16>
    %cst = arith.constant dense<0.000000e+00> : vector<8x96xf32>
    %7 = tpu.matmul %4, %6, %cst {dimension_numbers = #tpu.dot_dimension_numbers<[1], [0], [0], [1], [0, 0, 1, 1], [], []>} : vector<8x32xbf16>, vector<32x96xbf16>, vector<8x96xf32> -> vector<8x96xf32>
    %c0_5 = arith.constant 0 : index
    %c0_6 = arith.constant 0 : index
    %c0_7 = arith.constant 0 : index
    %8 = vector.load %arg7[%c0_5, %c0_6, %c0_7] : memref<1x1x96xf32, #tpu.memory_space<vmem>>, vector<1x1x96xf32>
    %9 = vector.shape_cast %8 : vector<1x1x96xf32> to vector<1x96xf32>
    %10 = vector.broadcast %9 : vector<1x96xf32> to vector<8x96xf32>
    %11 = arith.addf %7, %10 : vector<8x96xf32>
    %12 = vector.extract_strided_slice %11 {offsets = [0, 0], sizes = [8, 32], strides = [1, 1]} : vector<8x96xf32> to vector<8x32xf32>
    %13 = vector.shape_cast %12 : vector<8x32xf32> to vector<8x2x16xf32>
    %14 = tpu.transpose %13, [1, 0, 2] : vector<8x2x16xf32> -> vector<2x8x16xf32>
    %15 = arith.truncf %14 : vector<2x8x16xf32> to vector<2x8x16xbf16>
    %16 = vector.extract_strided_slice %11 {offsets = [0, 32], sizes = [8, 32], strides = [1, 1]} : vector<8x96xf32> to vector<8x32xf32>
    %17 = vector.shape_cast %16 : vector<8x32xf32> to vector<8x2x16xf32>
    %18 = tpu.transpose %17, [1, 0, 2] : vector<8x2x16xf32> -> vector<2x8x16xf32>
    %19 = arith.truncf %18 : vector<2x8x16xf32> to vector<2x8x16xbf16>
    %20 = vector.extract_strided_slice %11 {offsets = [0, 64], sizes = [8, 32], strides = [1, 1]} : vector<8x96xf32> to vector<8x32xf32>
    %21 = vector.shape_cast %20 : vector<8x32xf32> to vector<8x2x16xf32>
    %22 = tpu.transpose %21, [1, 0, 2] : vector<8x2x16xf32> -> vector<2x8x16xf32>
    %23 = arith.truncf %22 : vector<2x8x16xf32> to vector<2x8x16xbf16>
    "tpu.trace_start"() <{level = 10 : i32, message = "nqd,nkd->nqk"}> : () -> ()
    %cst_8 = arith.constant dense<0.000000e+00> : vector<2x8x8xf32>
    %24 = tpu.matmul %15, %19, %cst_8 {dimension_numbers = #tpu.dot_dimension_numbers<[2], [2], [1], [1], [0, 0, 0, 1, 1, 1], [0], [0]>} : vector<2x8x16xbf16>, vector<2x8x16xbf16>, vector<2x8x8xf32> -> vector<2x8x8xf32>
    "tpu.trace_stop"() : () -> ()
    %c0_9 = arith.constant 0 : index
    %c0_10 = arith.constant 0 : index
    %c0_11 = arith.constant 0 : index
    %25 = vector.load %arg3[%c0_9, %c0_10, %c0_11] : memref<1x1x8xf32, #tpu.memory_space<vmem>>, vector<1x1x8xf32>
    %26 = vector.broadcast %25 : vector<1x1x8xf32> to vector<2x8x8xf32>
    %27 = arith.addf %24, %26 : vector<2x8x8xf32>
    %cst_12 = arith.constant dense<0xFF800000> : vector<2x8xf32>
    %28 = vector.multi_reduction <maximumf>, %27, %cst_12 [2] : vector<2x8x8xf32> to vector<2x8xf32>
    %29 = vector.shape_cast %28 : vector<2x8xf32> to vector<2x8x1xf32>
    %30 = vector.broadcast %29 : vector<2x8x1xf32> to vector<2x8x8xf32>
    %31 = arith.subf %27, %30 : vector<2x8x8xf32>
    %32 = math.exp %31 : vector<2x8x8xf32>
    %cst_13 = arith.constant dense<0.000000e+00> : vector<2x8xf32>
    %33 = vector.multi_reduction <add>, %32, %cst_13 [2] : vector<2x8x8xf32> to vector<2x8xf32>
    %34 = vector.shape_cast %33 : vector<2x8xf32> to vector<2x8x1xf32>
    %35 = tpu.reciprocal %34 {approx = true} : vector<2x8x1xf32> -> vector<2x8x1xf32>
    %36 = vector.broadcast %35 : vector<2x8x1xf32> to vector<2x8x8xf32>
    %37 = arith.mulf %32, %36 : vector<2x8x8xf32>
    %38 = arith.truncf %37 : vector<2x8x8xf32> to vector<2x8x8xbf16>
    "tpu.trace_start"() <{level = 10 : i32, message = "nqk,nkd->nqd"}> : () -> ()
    %cst_14 = arith.constant dense<0.000000e+00> : vector<2x8x16xf32>
    %39 = tpu.matmul %38, %23, %cst_14 {dimension_numbers = #tpu.dot_dimension_numbers<[2], [1], [1], [2], [0, 0, 0, 1, 1, 2], [0], [0]>} : vector<2x8x8xbf16>, vector<2x8x16xbf16>, vector<2x8x16xf32> -> vector<2x8x16xf32>
    "tpu.trace_stop"() : () -> ()
    %40 = tpu.transpose %39, [1, 0, 2] : vector<2x8x16xf32> -> vector<8x2x16xf32>
    %41 = vector.shape_cast %40 : vector<8x2x16xf32> to vector<8x32xf32>
    %42 = arith.truncf %41 : vector<8x32xf32> to vector<8x32xbf16>
    %c0_15 = arith.constant 0 : index
    %c0_16 = arith.constant 0 : index
    %c0_17 = arith.constant 0 : index
    %43 = vector.load %arg8[%c0_15, %c0_16, %c0_17] : memref<1x32x32xbf16, #tpu.memory_space<vmem>>, vector<1x32x32xbf16>
    %44 = vector.shape_cast %43 : vector<1x32x32xbf16> to vector<32x32xbf16>
    %cst_18 = arith.constant dense<0.000000e+00> : vector<8x32xf32>
    %45 = tpu.matmul %42, %44, %cst_18 {dimension_numbers = #tpu.dot_dimension_numbers<[1], [0], [0], [1], [0, 0, 1, 1], [], []>} : vector<8x32xbf16>, vector<32x32xbf16>, vector<8x32xf32> -> vector<8x32xf32>
    %c0_19 = arith.constant 0 : index
    %c0_20 = arith.constant 0 : index
    %c0_21 = arith.constant 0 : index
    %46 = vector.load %arg9[%c0_19, %c0_20, %c0_21] : memref<1x1x32xf32, #tpu.memory_space<vmem>>, vector<1x1x32xf32>
    %47 = vector.shape_cast %46 : vector<1x1x32xf32> to vector<1x32xf32>
    %48 = vector.broadcast %47 : vector<1x32xf32> to vector<8x32xf32>
    %49 = arith.addf %45, %48 : vector<8x32xf32>
    %50 = arith.addf %49, %3 : vector<8x32xf32>
    %c0_22 = arith.constant 0 : index
    %c0_23 = arith.constant 0 : index
    %c0_24 = arith.constant 0 : index
    %51 = vector.load %arg10[%c0_22, %c0_23, %c0_24] : memref<1x1x32xf32, #tpu.memory_space<vmem>>, vector<1x1x32xf32>
    %52 = vector.shape_cast %51 : vector<1x1x32xf32> to vector<1x32xf32>
    %c0_25 = arith.constant 0 : index
    %c0_26 = arith.constant 0 : index
    %c0_27 = arith.constant 0 : index
    %53 = vector.load %arg11[%c0_25, %c0_26, %c0_27] : memref<1x1x32xf32, #tpu.memory_space<vmem>>, vector<1x1x32xf32>
    %54 = vector.shape_cast %53 : vector<1x1x32xf32> to vector<1x32xf32>
    %cst_28 = arith.constant dense<0.000000e+00> : vector<8xf32>
    %55 = vector.multi_reduction <add>, %50, %cst_28 [1] : vector<8x32xf32> to vector<8xf32>
    %56 = vector.shape_cast %55 : vector<8xf32> to vector<8x1xf32>
    %cst_29 = arith.constant 3.200000e+01 : f32
    %57 = vector.broadcast %cst_29 : f32 to vector<8x1xf32>
    %58 = arith.divf %56, %57 : vector<8x1xf32>
    %59 = vector.broadcast %58 : vector<8x1xf32> to vector<8x32xf32>
    %60 = arith.subf %50, %59 : vector<8x32xf32>
    %61 = arith.mulf %60, %60 : vector<8x32xf32>
    %cst_30 = arith.constant dense<0.000000e+00> : vector<8xf32>
    %62 = vector.multi_reduction <add>, %61, %cst_30 [1] : vector<8x32xf32> to vector<8xf32>
    %63 = vector.shape_cast %62 : vector<8xf32> to vector<8x1xf32>
    %cst_31 = arith.constant 3.200000e+01 : f32
    %64 = vector.broadcast %cst_31 : f32 to vector<8x1xf32>
    %65 = arith.divf %63, %64 : vector<8x1xf32>
    %66 = vector.broadcast %58 : vector<8x1xf32> to vector<8x32xf32>
    %67 = arith.subf %50, %66 : vector<8x32xf32>
    %cst_32 = arith.constant 9.99999996E-13 : f32
    %68 = vector.broadcast %cst_32 : f32 to vector<8x1xf32>
    %69 = arith.addf %65, %68 : vector<8x1xf32>
    %70 = math.rsqrt %69 : vector<8x1xf32>
    %71 = vector.broadcast %70 : vector<8x1xf32> to vector<8x32xf32>
    %72 = arith.mulf %67, %71 : vector<8x32xf32>
    %73 = vector.broadcast %52 : vector<1x32xf32> to vector<8x32xf32>
    %74 = arith.mulf %72, %73 : vector<8x32xf32>
    %75 = vector.broadcast %54 : vector<1x32xf32> to vector<8x32xf32>
    %76 = arith.addf %74, %75 : vector<8x32xf32>
    %77 = arith.truncf %76 : vector<8x32xf32> to vector<8x32xbf16>
    %c0_33 = arith.constant 0 : index
    %c0_34 = arith.constant 0 : index
    %c0_35 = arith.constant 0 : index
    %78 = vector.load %arg12[%c0_33, %c0_34, %c0_35] : memref<1x32x64xbf16, #tpu.memory_space<vmem>>, vector<1x32x64xbf16>
    %79 = vector.shape_cast %78 : vector<1x32x64xbf16> to vector<32x64xbf16>
    %cst_36 = arith.constant dense<0.000000e+00> : vector<8x64xf32>
    %80 = tpu.matmul %77, %79, %cst_36 {dimension_numbers = #tpu.dot_dimension_numbers<[1], [0], [0], [1], [0, 0, 1, 1], [], []>} : vector<8x32xbf16>, vector<32x64xbf16>, vector<8x64xf32> -> vector<8x64xf32>
    %c0_37 = arith.constant 0 : index
    %c0_38 = arith.constant 0 : index
    %c0_39 = arith.constant 0 : index
    %81 = vector.load %arg13[%c0_37, %c0_38, %c0_39] : memref<1x1x64xf32, #tpu.memory_space<vmem>>, vector<1x1x64xf32>
    %82 = vector.shape_cast %81 : vector<1x1x64xf32> to vector<1x64xf32>
    %83 = vector.broadcast %82 : vector<1x64xf32> to vector<8x64xf32>
    %84 = arith.addf %80, %83 : vector<8x64xf32>
    %cst_40 = arith.constant 5.000000e-01 : f32
    %85 = vector.broadcast %cst_40 : f32 to vector<8x64xf32>
    %86 = arith.mulf %85, %84 : vector<8x64xf32>
    %cst_41 = arith.constant 4.471500e-02 : f32
    %87 = vector.broadcast %cst_41 : f32 to vector<8x64xf32>
    %88 = arith.mulf %87, %84 : vector<8x64xf32>
    %89 = arith.mulf %88, %84 : vector<8x64xf32>
    %90 = arith.mulf %89, %84 : vector<8x64xf32>
    %91 = arith.addf %84, %90 : vector<8x64xf32>
    %cst_42 = arith.constant 0.797884583 : f32
    %92 = vector.broadcast %cst_42 : f32 to vector<8x64xf32>
    %93 = arith.mulf %92, %91 : vector<8x64xf32>
    %94 = math.tanh %93 : vector<8x64xf32>
    %cst_43 = arith.constant 1.000000e+00 : f32
    %95 = vector.broadcast %cst_43 : f32 to vector<8x64xf32>
    %96 = arith.addf %95, %94 : vector<8x64xf32>
    %97 = arith.mulf %86, %96 : vector<8x64xf32>
    %98 = arith.truncf %97 : vector<8x64xf32> to vector<8x64xbf16>
    %c0_44 = arith.constant 0 : index
    %c0_45 = arith.constant 0 : index
    %c0_46 = arith.constant 0 : index
    %99 = vector.load %arg14[%c0_44, %c0_45, %c0_46] : memref<1x64x32xbf16, #tpu.memory_space<vmem>>, vector<1x64x32xbf16>
    %100 = vector.shape_cast %99 : vector<1x64x32xbf16> to vector<64x32xbf16>
    %cst_47 = arith.constant dense<0.000000e+00> : vector<8x32xf32>
    %101 = tpu.matmul %98, %100, %cst_47 {dimension_numbers = #tpu.dot_dimension_numbers<[1], [0], [0], [1], [0, 0, 1, 1], [], []>} : vector<8x64xbf16>, vector<64x32xbf16>, vector<8x32xf32> -> vector<8x32xf32>
    %c0_48 = arith.constant 0 : index
    %c0_49 = arith.constant 0 : index
    %c0_50 = arith.constant 0 : index
    %102 = vector.load %arg15[%c0_48, %c0_49, %c0_50] : memref<1x1x32xf32, #tpu.memory_space<vmem>>, vector<1x1x32xf32>
    %103 = vector.shape_cast %102 : vector<1x1x32xf32> to vector<1x32xf32>
    %104 = vector.broadcast %103 : vector<1x32xf32> to vector<8x32xf32>
    %105 = arith.addf %101, %104 : vector<8x32xf32>
    %106 = arith.addf %105, %76 : vector<8x32xf32>
    %c0_51 = arith.constant 0 : index
    %c0_52 = arith.constant 0 : index
    %c0_53 = arith.constant 0 : index
    %107 = vector.load %arg16[%c0_51, %c0_52, %c0_53] : memref<1x1x32xf32, #tpu.memory_space<vmem>>, vector<1x1x32xf32>
    %108 = vector.shape_cast %107 : vector<1x1x32xf32> to vector<1x32xf32>
    %c0_54 = arith.constant 0 : index
    %c0_55 = arith.constant 0 : index
    %c0_56 = arith.constant 0 : index
    %109 = vector.load %arg17[%c0_54, %c0_55, %c0_56] : memref<1x1x32xf32, #tpu.memory_space<vmem>>, vector<1x1x32xf32>
    %110 = vector.shape_cast %109 : vector<1x1x32xf32> to vector<1x32xf32>
    %cst_57 = arith.constant dense<0.000000e+00> : vector<8xf32>
    %111 = vector.multi_reduction <add>, %106, %cst_57 [1] : vector<8x32xf32> to vector<8xf32>
    %112 = vector.shape_cast %111 : vector<8xf32> to vector<8x1xf32>
    %cst_58 = arith.constant 3.200000e+01 : f32
    %113 = vector.broadcast %cst_58 : f32 to vector<8x1xf32>
    %114 = arith.divf %112, %113 : vector<8x1xf32>
    %115 = vector.broadcast %114 : vector<8x1xf32> to vector<8x32xf32>
    %116 = arith.subf %106, %115 : vector<8x32xf32>
    %117 = arith.mulf %116, %116 : vector<8x32xf32>
    %cst_59 = arith.constant dense<0.000000e+00> : vector<8xf32>
    %118 = vector.multi_reduction <add>, %117, %cst_59 [1] : vector<8x32xf32> to vector<8xf32>
    %119 = vector.shape_cast %118 : vector<8xf32> to vector<8x1xf32>
    %cst_60 = arith.constant 3.200000e+01 : f32
    %120 = vector.broadcast %cst_60 : f32 to vector<8x1xf32>
    %121 = arith.divf %119, %120 : vector<8x1xf32>
    %122 = vector.broadcast %114 : vector<8x1xf32> to vector<8x32xf32>
    %123 = arith.subf %106, %122 : vector<8x32xf32>
    %cst_61 = arith.constant 9.99999996E-13 : f32
    %124 = vector.broadcast %cst_61 : f32 to vector<8x1xf32>
    %125 = arith.addf %121, %124 : vector<8x1xf32>
    %126 = math.rsqrt %125 : vector<8x1xf32>
    %127 = vector.broadcast %126 : vector<8x1xf32> to vector<8x32xf32>
    %128 = arith.mulf %123, %127 : vector<8x32xf32>
    %129 = vector.broadcast %108 : vector<1x32xf32> to vector<8x32xf32>
    %130 = arith.mulf %128, %129 : vector<8x32xf32>
    %131 = vector.broadcast %110 : vector<1x32xf32> to vector<8x32xf32>
    %132 = arith.addf %130, %131 : vector<8x32xf32>
    %c0_62 = arith.constant 0 : index
    %c0_63 = arith.constant 0 : index
    %133 = vector.load %arg19[%c0_62, %c0_63] : memref<8x32xf32, #tpu.memory_space<vmem>>, vector<8x32xf32>
    tpu.vector_store %arg19[%c0_62, %c0_63], %132 {strides = array<i32>} : memref<8x32xf32, #tpu.memory_space<vmem>>, vector<8x32xf32>,
    %c1_i32 = arith.constant 1 : i32
    %134 = arith.cmpi eq, %arg1, %c1_i32 : i32
    %135 = arith.extui %134 : i1 to i32
    %c0_i32_64 = arith.constant 0 : i32
    %136 = arith.cmpi ne, %135, %c0_i32_64 : i32
    scf.if %136 {
      %c0_65 = arith.constant 0 : index
      %c0_66 = arith.constant 0 : index
      %c0_67 = arith.constant 0 : index
      %137 = vector.load %arg18[%c0_65, %c0_66, %c0_67] : memref<1x8x32xf32, #tpu.memory_space<vmem>>, vector<1x8x32xf32>
      %138 = vector.shape_cast %137 : vector<1x8x32xf32> to vector<8x32xf32>
      %139 = vector.shape_cast %132 : vector<8x32xf32> to vector<1x8x32xf32>
      tpu.vector_store %arg18[%c0_65, %c0_66, %c0_67], %139 {strides = array<i32>} : memref<1x8x32xf32, #tpu.memory_space<vmem>>, vector<1x8x32xf32>,
    } else {
    }
    return
  }
  func.func @transform_0(%arg0: i32, %arg1: i32) -> (i32, i32, i32) {
    %c0_i32 = arith.constant 0 : i32
    %c0_i32_0 = arith.constant 0 : i32
    %c0_i32_1 = arith.constant 0 : i32
    return %arg0, %c0_i32, %c0_i32_0 : i32, i32, i32
  }
  func.func @transform_1(%arg0: i32, %arg1: i32) -> (i32, i32, i32) {
    %c0_i32 = arith.constant 0 : i32
    %c0_i32_0 = arith.constant 0 : i32
    %c0_i32_1 = arith.constant 0 : i32
    return %arg0, %c0_i32, %c0_i32_0 : i32, i32, i32
  }
  func.func @transform_2(%arg0: i32, %arg1: i32) -> (i32, i32) {
    %c0_i32 = arith.constant 0 : i32
    %c0_i32_0 = arith.constant 0 : i32
    %c0_i32_1 = arith.constant 0 : i32
    return %c0_i32, %c0_i32_0 : i32, i32
  }
  func.func @transform_3(%arg0: i32, %arg1: i32) -> (i32, i32) {
    %c0_i32 = arith.constant 0 : i32
    %c0_i32_0 = arith.constant 0 : i32
    %c0_i32_1 = arith.constant 0 : i32
    return %c0_i32, %c0_i32_0 : i32, i32
  }
  func.func @transform_4(%arg0: i32, %arg1: i32) -> (i32, i32, i32) {
    %c0_i32 = arith.constant 0 : i32
    %c0_i32_0 = arith.constant 0 : i32
    %c0_i32_1 = arith.constant 0 : i32
    return %arg1, %c0_i32, %c0_i32_0 : i32, i32, i32
  }
  func.func @transform_5(%arg0: i32, %arg1: i32) -> (i32, i32, i32) {
    %c0_i32 = arith.constant 0 : i32
    %c0_i32_0 = arith.constant 0 : i32
    %c0_i32_1 = arith.constant 0 : i32
    return %arg1, %c0_i32, %c0_i32_0 : i32, i32, i32
  }
  func.func @transform_6(%arg0: i32, %arg1: i32) -> (i32, i32, i32) {
    %c0_i32 = arith.constant 0 : i32
    %c0_i32_0 = arith.constant 0 : i32
    %c0_i32_1 = arith.constant 0 : i32
    return %arg1, %c0_i32, %c0_i32_0 : i32, i32, i32
  }
  func.func @transform_7(%arg0: i32, %arg1: i32) -> (i32, i32, i32) {
    %c0_i32 = arith.constant 0 : i32
    %c0_i32_0 = arith.constant 0 : i32
    %c0_i32_1 = arith.constant 0 : i32
    return %arg1, %c0_i32, %c0_i32_0 : i32, i32, i32
  }
  func.func @transform_8(%arg0: i32, %arg1: i32) -> (i32, i32, i32) {
    %c0_i32 = arith.constant 0 : i32
    %c0_i32_0 = arith.constant 0 : i32
    %c0_i32_1 = arith.constant 0 : i32
    return %arg1, %c0_i32, %c0_i32_0 : i32, i32, i32
  }
  func.func @transform_9(%arg0: i32, %arg1: i32) -> (i32, i32, i32) {
    %c0_i32 = arith.constant 0 : i32
    %c0_i32_0 = arith.constant 0 : i32
    %c0_i32_1 = arith.constant 0 : i32
    return %arg1, %c0_i32, %c0_i32_0 : i32, i32, i32
  }
  func.func @transform_10(%arg0: i32, %arg1: i32) -> (i32, i32, i32) {
    %c0_i32 = arith.constant 0 : i32
    %c0_i32_0 = arith.constant 0 : i32
    %c0_i32_1 = arith.constant 0 : i32
    return %arg1, %c0_i32, %c0_i32_0 : i32, i32, i32
  }
  func.func @transform_11(%arg0: i32, %arg1: i32) -> (i32, i32, i32) {
    %c0_i32 = arith.constant 0 : i32
    %c0_i32_0 = arith.constant 0 : i32
    %c0_i32_1 = arith.constant 0 : i32
    return %arg1, %c0_i32, %c0_i32_0 : i32, i32, i32
  }
  func.func @transform_12(%arg0: i32, %arg1: i32) -> (i32, i32, i32) {
    %c0_i32 = arith.constant 0 : i32
    %c0_i32_0 = arith.constant 0 : i32
    %c0_i32_1 = arith.constant 0 : i32
    return %arg1, %c0_i32, %c0_i32_0 : i32, i32, i32
  }
  func.func @transform_13(%arg0: i32, %arg1: i32) -> (i32, i32, i32) {
    %c0_i32 = arith.constant 0 : i32
    %c0_i32_0 = arith.constant 0 : i32
    %c0_i32_1 = arith.constant 0 : i32
    return %arg1, %c0_i32, %c0_i32_0 : i32, i32, i32
  }
  func.func @transform_14(%arg0: i32, %arg1: i32) -> (i32, i32, i32) {
    %c0_i32 = arith.constant 0 : i32
    %c0_i32_0 = arith.constant 0 : i32
    %c0_i32_1 = arith.constant 0 : i32
    return %arg1, %c0_i32, %c0_i32_0 : i32, i32, i32
  }
  func.func @transform_15(%arg0: i32, %arg1: i32) -> (i32, i32, i32) {
    %c0_i32 = arith.constant 0 : i32
    %c0_i32_0 = arith.constant 0 : i32
    %c0_i32_1 = arith.constant 0 : i32
    return %arg1, %c0_i32, %c0_i32_0 : i32, i32, i32
  }
  func.func @transform_16(%arg0: i32, %arg1: i32) -> (i32, i32, i32) {
    %c0_i32 = arith.constant 0 : i32
    %c0_i32_0 = arith.constant 0 : i32
    %c0_i32_1 = arith.constant 0 : i32
    return %arg0, %c0_i32, %c0_i32_0 : i32, i32, i32
  }
}

</mosaic_0001>

<llo_original>
// kernel: _lambda_.3
$region0: #{_lambda_.3}
  #allocation0 [shape = 'u32[]', space=smem, size = 0x4, offset = 0x4, fixed_abs, tag = 'smem constant byte address 0x4 - core index']
  #allocation1 [shape = 'u32[144,128]{1,0:T(1,128)}', space=vmem, size = 0x12000, scoped, tag = 'internal scratch']
  %s0 = inlined_call_operand.vmem [shape: f32[2,32], index: 0, kind: input, shape index: {}]
  %s1 = inlined_call_operand.vmem [shape: bf16[32,32], index: 1, kind: input, shape index: {}]
  %s2 = inlined_call_operand.vmem [shape: f32[1,32], index: 2, kind: input, shape index: {}]
  %s3 = inlined_call_operand.vmem [shape: bf16[32,2], index: 3, kind: input, shape index: {}]
  %s4 = inlined_call_operand.vmem [shape: f32[1,2], index: 4, kind: input, shape index: {}]
  %s5 = inlined_call_operand.hbm [shape: f32[2,2], index: 5, kind: output, shape index: {}]
  %s6 = sld [smem:[#allocation0]]
  $region30: #{_lambda_.3} parent=0
    _
  %s8 = ssub.s32 1, %s6
  %s9 = scalar_select 0, %s8, %s6
  $region1: #{_lambda_.3} parent=0
    #allocation2 [shape = 'u8[1024]{0}', space=vmem, size = 0x400, scoped, tag = 'output window, operand 0, single buffered']
    #allocation3 [shape = 's32[1]{0}', space=sflag, size = 0x4, scoped, tag = 'scoped memory for _lambda_.3']
    %10 = vsyncpa [#allocation3], 0
    // Predicated region
    $region2: #{_lambda_.3} parent=1 // pred_check
      _
    $region3: #{_lambda_.3} parent=1 // pred_check_branch
      %12 = sbr.rel (0) target = $region5
    $region4: #{_lambda_.3} parent=1 // pred_region
      _
    $region5: #{_lambda_.3} parent=1 // pred_fallthru
      _
    // Predicated region
    $region6: #{_lambda_.3} parent=1 // pred_check
      _
    $region7: #{_lambda_.3} parent=1 // pred_check_branch
      %14 = sbr.rel (0) target = $region9
    $region8: #{_lambda_.3} parent=1 // pred_region
      _
    $region9: #{_lambda_.3} parent=1 // pred_fallthru
      _
    // Predicated region
    $region10: #{_lambda_.3} parent=1 // pred_check
      _
    $region11: #{_lambda_.3} parent=1 // pred_check_branch
      %16 = sbr.rel (0) target = $region13
    $region12: #{_lambda_.3} parent=1 // pred_region
      _
    $region13: #{_lambda_.3} parent=1 // pred_fallthru
      _
    // Predicated region
    $region14: #{_lambda_.3} parent=1 // pred_check
      _
    $region15: #{_lambda_.3} parent=1 // pred_check_branch
      %18 = sbr.rel (0) target = $region17
    $region16: #{_lambda_.3} parent=1 // pred_region
      _
    $region17: #{_lambda_.3} parent=1 // pred_fallthru
      _
    // Predicated region
    $region18: #{_lambda_.3} parent=1 // pred_check
      _
    $region19: #{_lambda_.3} parent=1 // pred_check_branch
      %20 = sbr.rel (0) target = $region21
    $region20: #{_lambda_.3} parent=1 // pred_region
      _
    $region21: #{_lambda_.3} parent=1 // pred_fallthru
      _
    %v22 = vld [vmem:[%s0] sm:$0x3]
    %v23 = vpack.c.bf16 %v22, %v22
    %v24 = vld [vmem:[%s1] sm:$0xf]
    %v25 = vld [vmem:[%s1 + $0x4] sm:$0xf]
    %v26 = vld [vmem:[%s1 + $0x8] sm:$0xf]
    %v27 = vld [vmem:[%s1 + $0xc] sm:$0xf]
    %v28 = vld [vmem:[%s2] sm:$0x1]
    %v30 = vlaneseq
    %v31 = vshrl.u32 %v30, 7
    %v32 = vsub.s32 0, %v31
    %v33 = vrot.slane %v28, %v32
    %v39 = vunpack.c.l.b16 %v24
    %v40 = vunpack.c.l.b16 %v25
    %v41 = vunpack.c.l.b16 %v26
    %v42 = vunpack.c.l.b16 %v27
    %v43 = vpack.c.b16 %v40, %v39
    %v44 = vpack.c.b16 %v42, %v41
    %vm47 = vcmask 261120
    %v49 = vsel %vm47, %v23, 0
    %51 = vmatprep.subr.bf16.mxu0 0
    %52 = vmatpush1.bf16.msra.mxu0 %v43
    %53 = vmatprep.subr.bf16.mxu0 0
    %54 = vmatpush1.bf16.msra.mxu0 %v44
    %55 = vmatprep.subr.bf16.mxu0 0
    %56 = vmatpush1.bf16.msra.mxu0 0
    %57 = vmatprep.subr.bf16.mxu0 0
    %58 = vmatpush1.bf16.msra.mxu0 0
    %59 = vmatprep.subr.bf16.mxu0 0
    %60 = vmatpush1.bf16.msra.mxu0 0
    %61 = vmatprep.subr.bf16.mxu0 0
    %62 = vmatpush1.bf16.msra.mxu0 0
    %63 = vmatprep.subr.bf16.mxu0 0
    %64 = vmatpush1.bf16.msra.mxu0 0
    %65 = vmatprep.subr.bf16.mxu0 0
    %66 = vmatpush1.bf16.msra.mxu0 0
    %67 = vmatprep.subr.bf16.mxu0 0
    %68 = vmatpush1.bf16.msra.mxu0 0
    %69 = vmatprep.subr.bf16.mxu0 0
    %70 = vmatpush1.bf16.msra.mxu0 0
    %71 = vmatprep.subr.bf16.mxu0 0
    %72 = vmatpush1.bf16.msra.mxu0 0
    %73 = vmatprep.subr.bf16.mxu0 0
    %74 = vmatpush1.bf16.msra.mxu0 0
    %75 = vmatprep.subr.bf16.mxu0 0
    %76 = vmatpush1.bf16.msra.mxu0 0
    %77 = vmatprep.subr.bf16.mxu0 0
    %78 = vmatpush1.bf16.msra.mxu0 0
    %79 = vmatprep.subr.bf16.mxu0 0
    %80 = vmatpush1.bf16.msra.mxu0 0
    %81 = vmatprep.subr.bf16.mxu0 0
    %82 = vmatpush1.bf16.msra.mxu0 0
    %83 = vmatprep.mubr.bf16.mxu0 0
    %84 = vmatmul.mubr.bf16.gmra.mrb[0].mxu0 %v49
    %v85 = vpop.f32.mrb[0].mxu0
    %v86 = vadd.f32 %v33, %v85
    %v87 = vpop.f32.mrb[0].mxu0
    %v88 = vpop.f32.mrb[0].mxu0
    %v89 = vpop.f32.mrb[0].mxu0
    %90 = vdwg.mxu0
    %v91 = vtanh.pop %v86
    %v92 = vpack.c.bf16 %v91, %v91
    %v93 = vld [vmem:[%s3] sm:$0xf]
    %v94 = vld [vmem:[%s3 + $0x4] sm:$0xf]
    %v95 = vld [vmem:[%s3 + $0x8] sm:$0xf]
    %v96 = vld [vmem:[%s3 + $0xc] sm:$0xf]
    %v97 = vld [vmem:[%s4] sm:$0x1]
    %v99 = vlaneseq
    %v100 = vshrl.u32 %v99, 7
    %v101 = vsub.s32 0, %v100
    %v102 = vrot.slane %v97, %v101
    %v108 = vunpack.c.l.b16 %v93
    %v109 = vunpack.c.l.b16 %v94
    %v110 = vunpack.c.l.b16 %v95
    %v111 = vunpack.c.l.b16 %v96
    %v112 = vpack.c.b16 %v109, %v108
    %v113 = vpack.c.b16 %v111, %v110
    %v117 = vsel %vm47, %v92, 0
    %119 = vmatprep.subr.bf16.mxu0 0
    %120 = vmatpush1.bf16.msra.mxu0 %v112
    %121 = vmatprep.subr.bf16.mxu0 0
    %122 = vmatpush1.bf16.msra.mxu0 %v113
    %123 = vmatprep.subr.bf16.mxu0 0
    %124 = vmatpush1.bf16.msra.mxu0 0
    %125 = vmatprep.subr.bf16.mxu0 0
    %126 = vmatpush1.bf16.msra.mxu0 0
    %127 = vmatprep.subr.bf16.mxu0 0
    %128 = vmatpush1.bf16.msra.mxu0 0
    %129 = vmatprep.subr.bf16.mxu0 0
    %130 = vmatpush1.bf16.msra.mxu0 0
    %131 = vmatprep.subr.bf16.mxu0 0
    %132 = vmatpush1.bf16.msra.mxu0 0
    %133 = vmatprep.subr.bf16.mxu0 0
    %134 = vmatpush1.bf16.msra.mxu0 0
    %135 = vmatprep.subr.bf16.mxu0 0
    %136 = vmatpush1.bf16.msra.mxu0 0
    %137 = vmatprep.subr.bf16.mxu0 0
    %138 = vmatpush1.bf16.msra.mxu0 0
    %139 = vmatprep.subr.bf16.mxu0 0
    %140 = vmatpush1.bf16.msra.mxu0 0
    %141 = vmatprep.subr.bf16.mxu0 0
    %142 = vmatpush1.bf16.msra.mxu0 0
    %143 = vmatprep.subr.bf16.mxu0 0
    %144 = vmatpush1.bf16.msra.mxu0 0
    %145 = vmatprep.subr.bf16.mxu0 0
    %146 = vmatpush1.bf16.msra.mxu0 0
    %147 = vmatprep.subr.bf16.mxu0 0
    %148 = vmatpush1.bf16.msra.mxu0 0
    %149 = vmatprep.subr.bf16.mxu0 0
    %150 = vmatpush1.bf16.msra.mxu0 0
    %151 = vmatprep.mubr.bf16.mxu0 0
    %152 = vmatmul.mubr.bf16.gmra.mrb[0].mxu0 %v117
    %v153 = vpop.f32.mrb[0].mxu0
    %v154 = vadd.f32 %v102, %v153
    %v155 = vpop.f32.mrb[0].mxu0
    %v156 = vpop.f32.mrb[0].mxu0
    %v157 = vpop.f32.mrb[0].mxu0
    %158 = vdwg.mxu0
    %vm159 = vcmask 9216
    %160 = vst.msk [vmem:[#allocation2] sm:$0x3] %vm159, %v154
    // Predicated region
    $region22: #{_lambda_.3} parent=1 // pred_check
      _
    $region23: #{_lambda_.3} parent=1 // pred_check_branch
      %162 = sbr.rel (0) target = $region25
    $region24: #{_lambda_.3} parent=1 // pred_region
      %s164 = ssub.s32 32, 32
      %165 = vsyncadd [#allocation3], %s164
      %s167 = sshll.u32 [#allocation2], 4
      %s168 = int_to_ptr.vmem [resolvable:$true] %s167
      %170 = dma.vmem_to_hbm [thread:$0]  %s168, 32, %s5, [#allocation3]
    $region25: #{_lambda_.3} parent=1 // pred_fallthru
      _
    // Predicated region
    $region26: #{_lambda_.3} parent=1 // pred_check
      _
    $region27: #{_lambda_.3} parent=1 // pred_check_branch
      %172 = sbr.rel (0) target = $region29
    $region28: #{_lambda_.3} parent=1 // pred_region
      %173 = dma.done [#allocation3], 32
    $region29: #{_lambda_.3} parent=1 // pred_fallthru
      _
    %174 = vsyncpa [#allocation3], 1

// kernel: _lambda_.2
$region0: #{_lambda_.2}
  #allocation0 [shape = 'u32[]', space=smem, size = 0x4, offset = 0x4, fixed_abs, tag = 'smem constant byte address 0x4 - core index']
  #allocation1 [shape = 'u32[144,128]{1,0:T(1,128)}', space=vmem, size = 0x12000, scoped, tag = 'internal scratch']
  #allocation2 [shape = 'f32[8,32]{1,0:T(8,128)}', space=vmem, size = 0x1000, scoped, tag = 'scratch operand']
  %s0 = inlined_call_operand.vmem [shape: f32[2,8,32], index: 0, kind: input, shape index: {}, may-alias: {0,16}]
  %s1 = inlined_call_operand.vmem [shape: f32[2,1,8], index: 1, kind: input, shape index: {}]
  %s2 = inlined_call_operand.vmem [shape: f32[1,32], index: 2, kind: input, shape index: {}]
  %s3 = inlined_call_operand.vmem [shape: f32[1,32], index: 3, kind: input, shape index: {}]
  %s4 = inlined_call_operand.vmem [shape: bf16[2,32,96], index: 4, kind: input, shape index: {}]
  %s5 = inlined_call_operand.vmem [shape: f32[2,1,96], index: 5, kind: input, shape index: {}]
  %s6 = inlined_call_operand.vmem [shape: bf16[2,32,32], index: 6, kind: input, shape index: {}]
  %s7 = inlined_call_operand.vmem [shape: f32[2,1,32], index: 7, kind: input, shape index: {}, may-alias: {7,9,13,15}]
  %s8 = inlined_call_operand.vmem [shape: f32[2,1,32], index: 8, kind: input, shape index: {}, may-alias: {8,14}]
  %s9 = inlined_call_operand.vmem [shape: f32[2,1,32], index: 9, kind: input, shape index: {}, may-alias: {7,9,13,15}]
  %s10 = inlined_call_operand.vmem [shape: bf16[2,32,64], index: 10, kind: input, shape index: {}]
  %s11 = inlined_call_operand.vmem [shape: f32[2,1,64], index: 11, kind: input, shape index: {}]
  %s12 = inlined_call_operand.vmem [shape: bf16[2,64,32], index: 12, kind: input, shape index: {}]
  %s13 = inlined_call_operand.vmem [shape: f32[2,1,32], index: 13, kind: input, shape index: {}, may-alias: {7,9,13,15}]
  %s14 = inlined_call_operand.vmem [shape: f32[2,1,32], index: 14, kind: input, shape index: {}, may-alias: {8,14}]
  %s15 = inlined_call_operand.vmem [shape: f32[2,1,32], index: 15, kind: input, shape index: {}, may-alias: {7,9,13,15}]
  %s16 = inlined_call_operand.vmem [shape: f32[2,8,32], index: 16, kind: output, shape index: {}, may-alias: {0,16}]
  %s17 = sld [smem:[#allocation0]]
  $region105: #{_lambda_.2} parent=0
    _
  %s19 = ssub.s32 1, %s17
  %s20 = scalar_select 0, %s19, %s17
  loop: start=0, step=1, limit=6
  $region2: #{_lambda_.2} parent=0 // loop_pre_header
    _
  $region3: #{_lambda_.2} parent=0 // loop_header
    %s22 = sphi 0, %s26
    %p23 = scmp.ge.s32.totalorder %s22, 6
    %s29 = sphi 0, %s41
    %s30 = sphi 0, %s37
    %s31 = sphi 0, %s29
    %s32 = sphi 0, %s30
    %s33 = sphi 0, %s31
    %s34 = sphi 0, %s32
    %s44 = sphi 0, %s46
    %s47 = sphi 0, %s44
    %s48 = sphi 0, %s47
    %s64 = sphi 0, %s48
    %s70 = sphi 0, %s72
    %s73 = sphi 0, %s70
    %s74 = sphi 0, %s73
    %s90 = sphi 0, %s74
    %s94 = sphi 0, %s94
    %s96 = sphi 0, %s94
    %s97 = sphi 0, %s96
    %s111 = sphi 0, %s97
    %s115 = sphi 0, %s115
    %s117 = sphi 0, %s115
    %s118 = sphi 0, %s117
    %s132 = sphi 0, %s118
    %s138 = sphi 0, %s140
    %s141 = sphi 0, %s138
    %s142 = sphi 0, %s141
    %s158 = sphi 0, %s142
    %s164 = sphi 0, %s166
    %s167 = sphi 0, %s164
    %s168 = sphi 0, %s167
    %s184 = sphi 0, %s168
    %s190 = sphi 0, %s192
    %s193 = sphi 0, %s190
    %s194 = sphi 0, %s193
    %s210 = sphi 0, %s194
    %s216 = sphi 0, %s218
    %s219 = sphi 0, %s216
    %s220 = sphi 0, %s219
    %s236 = sphi 0, %s220
    %s242 = sphi 0, %s244
    %s245 = sphi 0, %s242
    %s246 = sphi 0, %s245
    %s262 = sphi 0, %s246
    %s268 = sphi 0, %s270
    %s271 = sphi 0, %s268
    %s272 = sphi 0, %s271
    %s288 = sphi 0, %s272
    %s294 = sphi 0, %s296
    %s297 = sphi 0, %s294
    %s298 = sphi 0, %s297
    %s314 = sphi 0, %s298
    %s320 = sphi 0, %s322
    %s323 = sphi 0, %s320
    %s324 = sphi 0, %s323
    %s340 = sphi 0, %s324
    %s346 = sphi 0, %s348
    %s349 = sphi 0, %s346
    %s350 = sphi 0, %s349
    %s366 = sphi 0, %s350
    %s372 = sphi 0, %s374
    %s375 = sphi 0, %s372
    %s376 = sphi 0, %s375
    %s392 = sphi 0, %s376
    %s398 = sphi 0, %s400
    %s401 = sphi 0, %s398
    %s402 = sphi 0, %s401
    %s418 = sphi 0, %s402
    %s424 = sphi 0, %s426
    %s427 = sphi 0, %s424
    %s428 = sphi 0, %s427
    %s444 = sphi 0, %s428
    %s450 = sphi 0, %s452
    %s453 = sphi 0, %s450
    %s454 = sphi 0, %s453
    %s470 = sphi 0, %s454
  $region4: #{_lambda_.2} parent=0 // loop_header_branch
    %25 = sbr.rel (%p23) target = $region8
  $region5: #{_lambda_.2} parent=0 // loop_body
    %s27 = ssub.s32 %s22, 1
    %s28 = ssub.s32 %s22, 2
    %s35 = sadd.s32 1, %s30
    %p36 = scmp.ge.s32.totalorder %s35, 2
    %s37 = scalar_select %p36, 0, %s35
    %s38 = sadd.s32 1, %s29
    %s39 = scalar_select %p36, %s38, %s29
    %p40 = scmp.ge.s32.totalorder %s39, 2
    %s41 = scalar_select %p40, 0, %s39
    %s42 = ssub.s32 %s29, %s41
    %p43 = scmp.eq.s32.totalorder %s42, 0
    %s45 = sadd.s32 %s44, 1
    %s46 = scalar_select %p43, %s44, %s45
    %p49 = pneg %p43
    %p50 = scmp.eq.s32.totalorder %s22, 3
    %p51 = por %p49, %p50
    %p52 = scmp.ne.s32.totalorder %s44, %s47
    %p53 = scmp.eq.s32.totalorder %s22, 0
    %p54 = por %p52, %p53
    %p55 = scmp.ne.s32.totalorder %s44, %s47
    %p56 = scmp.eq.s32.totalorder %s27, 3
    %p57 = por %p55, %p56
    %p58 = scmp.ne.s32.totalorder %s47, %s48
    %p59 = scmp.eq.s32.totalorder %s27, 0
    %p60 = por %p58, %p59
    %p61 = scmp.ne.s32.totalorder %s47, %s48
    %p62 = scmp.eq.s32.totalorder %s28, 3
    %p63 = por %p61, %p62
    %p65 = scmp.ne.s32.totalorder %s48, %s64
    %p66 = scmp.eq.s32.totalorder %s28, 0
    %p67 = por %p65, %p66
    %s68 = ssub.s32 %s29, %s41
    %p69 = scmp.eq.s32.totalorder %s68, 0
    %s71 = sadd.s32 %s70, 1
    %s72 = scalar_select %p69, %s70, %s71
    %p75 = pneg %p69
    %p76 = scmp.eq.s32.totalorder %s22, 3
    %p77 = por %p75, %p76
    %p78 = scmp.ne.s32.totalorder %s70, %s73
    %p79 = scmp.eq.s32.totalorder %s22, 0
    %p80 = por %p78, %p79
    %p81 = scmp.ne.s32.totalorder %s70, %s73
    %p82 = scmp.eq.s32.totalorder %s27, 3
    %p83 = por %p81, %p82
    %p84 = scmp.ne.s32.totalorder %s73, %s74
    %p85 = scmp.eq.s32.totalorder %s27, 0
    %p86 = por %p84, %p85
    %p87 = scmp.ne.s32.totalorder %s73, %s74
    %p88 = scmp.eq.s32.totalorder %s28, 3
    %p89 = por %p87, %p88
    %p91 = scmp.ne.s32.totalorder %s74, %s90
    %p92 = scmp.eq.s32.totalorder %s28, 0
    %p93 = por %p91, %p92
    %s95 = sadd.s32 %s94, 1
    %p98 = scmp.eq.s32.totalorder %s22, 3
    %p99 = scmp.ne.s32.totalorder %s94, %s96
    %p100 = scmp.eq.s32.totalorder %s22, 0
    %p101 = por %p99, %p100
    %p102 = scmp.ne.s32.totalorder %s94, %s96
    %p103 = scmp.eq.s32.totalorder %s27, 3
    %p104 = por %p102, %p103
    %p105 = scmp.ne.s32.totalorder %s96, %s97
    %p106 = scmp.eq.s32.totalorder %s27, 0
    %p107 = por %p105, %p106
    %p108 = scmp.ne.s32.totalorder %s96, %s97
    %p109 = scmp.eq.s32.totalorder %s28, 3
    %p110 = por %p108, %p109
    %p112 = scmp.ne.s32.totalorder %s97, %s111
    %p113 = scmp.eq.s32.totalorder %s28, 0
    %p114 = por %p112, %p113
    %s116 = sadd.s32 %s115, 1
    %p119 = scmp.eq.s32.totalorder %s22, 3
    %p120 = scmp.ne.s32.totalorder %s115, %s117
    %p121 = scmp.eq.s32.totalorder %s22, 0
    %p122 = por %p120, %p121
    %p123 = scmp.ne.s32.totalorder %s115, %s117
    %p124 = scmp.eq.s32.totalorder %s27, 3
    %p125 = por %p123, %p124
    %p126 = scmp.ne.s32.totalorder %s117, %s118
    %p127 = scmp.eq.s32.totalorder %s27, 0
    %p128 = por %p126, %p127
    %p129 = scmp.ne.s32.totalorder %s117, %s118
    %p130 = scmp.eq.s32.totalorder %s28, 3
    %p131 = por %p129, %p130
    %p133 = scmp.ne.s32.totalorder %s118, %s132
    %p134 = scmp.eq.s32.totalorder %s28, 0
    %p135 = por %p133, %p134
    %s136 = ssub.s32 %s30, %s37
    %p137 = scmp.eq.s32.totalorder %s136, 0
    %s139 = sadd.s32 %s138, 1
    %s140 = scalar_select %p137, %s138, %s139
    %p143 = pneg %p137
    %p144 = scmp.eq.s32.totalorder %s22, 3
    %p145 = por %p143, %p144
    %p146 = scmp.ne.s32.totalorder %s138, %s141
    %p147 = scmp.eq.s32.totalorder %s22, 0
    %p148 = por %p146, %p147
    %p149 = scmp.ne.s32.totalorder %s138, %s141
    %p150 = scmp.eq.s32.totalorder %s27, 3
    %p151 = por %p149, %p150
    %p152 = scmp.ne.s32.totalorder %s141, %s142
    %p153 = scmp.eq.s32.totalorder %s27, 0
    %p154 = por %p152, %p153
    %p155 = scmp.ne.s32.totalorder %s141, %s142
    %p156 = scmp.eq.s32.totalorder %s28, 3
    %p157 = por %p155, %p156
    %p159 = scmp.ne.s32.totalorder %s142, %s158
    %p160 = scmp.eq.s32.totalorder %s28, 0
    %p161 = por %p159, %p160
    %s162 = ssub.s32 %s30, %s37
    %p163 = scmp.eq.s32.totalorder %s162, 0
    %s165 = sadd.s32 %s164, 1
    %s166 = scalar_select %p163, %s164, %s165
    %p169 = pneg %p163
    %p170 = scmp.eq.s32.totalorder %s22, 3
    %p171 = por %p169, %p170
    %p172 = scmp.ne.s32.totalorder %s164, %s167
    %p173 = scmp.eq.s32.totalorder %s22, 0
    %p174 = por %p172, %p173
    %p175 = scmp.ne.s32.totalorder %s164, %s167
    %p176 = scmp.eq.s32.totalorder %s27, 3
    %p177 = por %p175, %p176
    %p178 = scmp.ne.s32.totalorder %s167, %s168
    %p179 = scmp.eq.s32.totalorder %s27, 0
    %p180 = por %p178, %p179
    %p181 = scmp.ne.s32.totalorder %s167, %s168
    %p182 = scmp.eq.s32.totalorder %s28, 3
    %p183 = por %p181, %p182
    %p185 = scmp.ne.s32.totalorder %s168, %s184
    %p186 = scmp.eq.s32.totalorder %s28, 0
    %p187 = por %p185, %p186
    %s188 = ssub.s32 %s30, %s37
    %p189 = scmp.eq.s32.totalorder %s188, 0
    %s191 = sadd.s32 %s190, 1
    %s192 = scalar_select %p189, %s190, %s191
    %p195 = pneg %p189
    %p196 = scmp.eq.s32.totalorder %s22, 3
    %p197 = por %p195, %p196
    %p198 = scmp.ne.s32.totalorder %s190, %s193
    %p199 = scmp.eq.s32.totalorder %s22, 0
    %p200 = por %p198, %p199
    %p201 = scmp.ne.s32.totalorder %s190, %s193
    %p202 = scmp.eq.s32.totalorder %s27, 3
    %p203 = por %p201, %p202
    %p204 = scmp.ne.s32.totalorder %s193, %s194
    %p205 = scmp.eq.s32.totalorder %s27, 0
    %p206 = por %p204, %p205
    %p207 = scmp.ne.s32.totalorder %s193, %s194
    %p208 = scmp.eq.s32.totalorder %s28, 3
    %p209 = por %p207, %p208
    %p211 = scmp.ne.s32.totalorder %s194, %s210
    %p212 = scmp.eq.s32.totalorder %s28, 0
    %p213 = por %p211, %p212
    %s214 = ssub.s32 %s30, %s37
    %p215 = scmp.eq.s32.totalorder %s214, 0
    %s217 = sadd.s32 %s216, 1
    %s218 = scalar_select %p215, %s216, %s217
    %p221 = pneg %p215
    %p222 = scmp.eq.s32.totalorder %s22, 3
    %p223 = por %p221, %p222
    %p224 = scmp.ne.s32.totalorder %s216, %s219
    %p225 = scmp.eq.s32.totalorder %s22, 0
    %p226 = por %p224, %p225
    %p227 = scmp.ne.s32.totalorder %s216, %s219
    %p228 = scmp.eq.s32.totalorder %s27, 3
    %p229 = por %p227, %p228
    %p230 = scmp.ne.s32.totalorder %s219, %s220
    %p231 = scmp.eq.s32.totalorder %s27, 0
    %p232 = por %p230, %p231
    %p233 = scmp.ne.s32.totalorder %s219, %s220
    %p234 = scmp.eq.s32.totalorder %s28, 3
    %p235 = por %p233, %p234
    %p237 = scmp.ne.s32.totalorder %s220, %s236
    %p238 = scmp.eq.s32.totalorder %s28, 0
    %p239 = por %p237, %p238
    %s240 = ssub.s32 %s30, %s37
    %p241 = scmp.eq.s32.totalorder %s240, 0
    %s243 = sadd.s32 %s242, 1
    %s244 = scalar_select %p241, %s242, %s243
    %p247 = pneg %p241
    %p248 = scmp.eq.s32.totalorder %s22, 3
    %p249 = por %p247, %p248
    %p250 = scmp.ne.s32.totalorder %s242, %s245
    %p251 = scmp.eq.s32.totalorder %s22, 0
    %p252 = por %p250, %p251
    %p253 = scmp.ne.s32.totalorder %s242, %s245
    %p254 = scmp.eq.s32.totalorder %s27, 3
    %p255 = por %p253, %p254
    %p256 = scmp.ne.s32.totalorder %s245, %s246
    %p257 = scmp.eq.s32.totalorder %s27, 0
    %p258 = por %p256, %p257
    %p259 = scmp.ne.s32.totalorder %s245, %s246
    %p260 = scmp.eq.s32.totalorder %s28, 3
    %p261 = por %p259, %p260
    %p263 = scmp.ne.s32.totalorder %s246, %s262
    %p264 = scmp.eq.s32.totalorder %s28, 0
    %p265 = por %p263, %p264
    %s266 = ssub.s32 %s30, %s37
    %p267 = scmp.eq.s32.totalorder %s266, 0
    %s269 = sadd.s32 %s268, 1
    %s270 = scalar_select %p267, %s268, %s269
    %p273 = pneg %p267
    %p274 = scmp.eq.s32.totalorder %s22, 3
    %p275 = por %p273, %p274
    %p276 = scmp.ne.s32.totalorder %s268, %s271
    %p277 = scmp.eq.s32.totalorder %s22, 0
    %p278 = por %p276, %p277
    %p279 = scmp.ne.s32.totalorder %s268, %s271
    %p280 = scmp.eq.s32.totalorder %s27, 3
    %p281 = por %p279, %p280
    %p282 = scmp.ne.s32.totalorder %s271, %s272
    %p283 = scmp.eq.s32.totalorder %s27, 0
    %p284 = por %p282, %p283
    %p285 = scmp.ne.s32.totalorder %s271, %s272
    %p286 = scmp.eq.s32.totalorder %s28, 3
    %p287 = por %p285, %p286
    %p289 = scmp.ne.s32.totalorder %s272, %s288
    %p290 = scmp.eq.s32.totalorder %s28, 0
    %p291 = por %p289, %p290
    %s292 = ssub.s32 %s30, %s37
    %p293 = scmp.eq.s32.totalorder %s292, 0
    %s295 = sadd.s32 %s294, 1
    %s296 = scalar_select %p293, %s294, %s295
    %p299 = pneg %p293
    %p300 = scmp.eq.s32.totalorder %s22, 3
    %p301 = por %p299, %p300
    %p302 = scmp.ne.s32.totalorder %s294, %s297
    %p303 = scmp.eq.s32.totalorder %s22, 0
    %p304 = por %p302, %p303
    %p305 = scmp.ne.s32.totalorder %s294, %s297
    %p306 = scmp.eq.s32.totalorder %s27, 3
    %p307 = por %p305, %p306
    %p308 = scmp.ne.s32.totalorder %s297, %s298
    %p309 = scmp.eq.s32.totalorder %s27, 0
    %p310 = por %p308, %p309
    %p311 = scmp.ne.s32.totalorder %s297, %s298
    %p312 = scmp.eq.s32.totalorder %s28, 3
    %p313 = por %p311, %p312
    %p315 = scmp.ne.s32.totalorder %s298, %s314
    %p316 = scmp.eq.s32.totalorder %s28, 0
    %p317 = por %p315, %p316
    %s318 = ssub.s32 %s30, %s37
    %p319 = scmp.eq.s32.totalorder %s318, 0
    %s321 = sadd.s32 %s320, 1
    %s322 = scalar_select %p319, %s320, %s321
    %p325 = pneg %p319
    %p326 = scmp.eq.s32.totalorder %s22, 3
    %p327 = por %p325, %p326
    %p328 = scmp.ne.s32.totalorder %s320, %s323
    %p329 = scmp.eq.s32.totalorder %s22, 0
    %p330 = por %p328, %p329
    %p331 = scmp.ne.s32.totalorder %s320, %s323
    %p332 = scmp.eq.s32.totalorder %s27, 3
    %p333 = por %p331, %p332
    %p334 = scmp.ne.s32.totalorder %s323, %s324
    %p335 = scmp.eq.s32.totalorder %s27, 0
    %p336 = por %p334, %p335
    %p337 = scmp.ne.s32.totalorder %s323, %s324
    %p338 = scmp.eq.s32.totalorder %s28, 3
    %p339 = por %p337, %p338
    %p341 = scmp.ne.s32.totalorder %s324, %s340
    %p342 = scmp.eq.s32.totalorder %s28, 0
    %p343 = por %p341, %p342
    %s344 = ssub.s32 %s30, %s37
    %p345 = scmp.eq.s32.totalorder %s344, 0
    %s347 = sadd.s32 %s346, 1
    %s348 = scalar_select %p345, %s346, %s347
    %p351 = pneg %p345
    %p352 = scmp.eq.s32.totalorder %s22, 3
    %p353 = por %p351, %p352
    %p354 = scmp.ne.s32.totalorder %s346, %s349
    %p355 = scmp.eq.s32.totalorder %s22, 0
    %p356 = por %p354, %p355
    %p357 = scmp.ne.s32.totalorder %s346, %s349
    %p358 = scmp.eq.s32.totalorder %s27, 3
    %p359 = por %p357, %p358
    %p360 = scmp.ne.s32.totalorder %s349, %s350
    %p361 = scmp.eq.s32.totalorder %s27, 0
    %p362 = por %p360, %p361
    %p363 = scmp.ne.s32.totalorder %s349, %s350
    %p364 = scmp.eq.s32.totalorder %s28, 3
    %p365 = por %p363, %p364
    %p367 = scmp.ne.s32.totalorder %s350, %s366
    %p368 = scmp.eq.s32.totalorder %s28, 0
    %p369 = por %p367, %p368
    %s370 = ssub.s32 %s30, %s37
    %p371 = scmp.eq.s32.totalorder %s370, 0
    %s373 = sadd.s32 %s372, 1
    %s374 = scalar_select %p371, %s372, %s373
    %p377 = pneg %p371
    %p378 = scmp.eq.s32.totalorder %s22, 3
    %p379 = por %p377, %p378
    %p380 = scmp.ne.s32.totalorder %s372, %s375
    %p381 = scmp.eq.s32.totalorder %s22, 0
    %p382 = por %p380, %p381
    %p383 = scmp.ne.s32.totalorder %s372, %s375
    %p384 = scmp.eq.s32.totalorder %s27, 3
    %p385 = por %p383, %p384
    %p386 = scmp.ne.s32.totalorder %s375, %s376
    %p387 = scmp.eq.s32.totalorder %s27, 0
    %p388 = por %p386, %p387
    %p389 = scmp.ne.s32.totalorder %s375, %s376
    %p390 = scmp.eq.s32.totalorder %s28, 3
    %p391 = por %p389, %p390
    %p393 = scmp.ne.s32.totalorder %s376, %s392
    %p394 = scmp.eq.s32.totalorder %s28, 0
    %p395 = por %p393, %p394
    %s396 = ssub.s32 %s30, %s37
    %p397 = scmp.eq.s32.totalorder %s396, 0
    %s399 = sadd.s32 %s398, 1
    %s400 = scalar_select %p397, %s398, %s399
    %p403 = pneg %p397
    %p404 = scmp.eq.s32.totalorder %s22, 3
    %p405 = por %p403, %p404
    %p406 = scmp.ne.s32.totalorder %s398, %s401
    %p407 = scmp.eq.s32.totalorder %s22, 0
    %p408 = por %p406, %p407
    %p409 = scmp.ne.s32.totalorder %s398, %s401
    %p410 = scmp.eq.s32.totalorder %s27, 3
    %p411 = por %p409, %p410
    %p412 = scmp.ne.s32.totalorder %s401, %s402
    %p413 = scmp.eq.s32.totalorder %s27, 0
    %p414 = por %p412, %p413
    %p415 = scmp.ne.s32.totalorder %s401, %s402
    %p416 = scmp.eq.s32.totalorder %s28, 3
    %p417 = por %p415, %p416
    %p419 = scmp.ne.s32.totalorder %s402, %s418
    %p420 = scmp.eq.s32.totalorder %s28, 0
    %p421 = por %p419, %p420
    %s422 = ssub.s32 %s30, %s37
    %p423 = scmp.eq.s32.totalorder %s422, 0
    %s425 = sadd.s32 %s424, 1
    %s426 = scalar_select %p423, %s424, %s425
    %p429 = pneg %p423
    %p430 = scmp.eq.s32.totalorder %s22, 3
    %p431 = por %p429, %p430
    %p432 = scmp.ne.s32.totalorder %s424, %s427
    %p433 = scmp.eq.s32.totalorder %s22, 0
    %p434 = por %p432, %p433
    %p435 = scmp.ne.s32.totalorder %s424, %s427
    %p436 = scmp.eq.s32.totalorder %s27, 3
    %p437 = por %p435, %p436
    %p438 = scmp.ne.s32.totalorder %s427, %s428
    %p439 = scmp.eq.s32.totalorder %s27, 0
    %p440 = por %p438, %p439
    %p441 = scmp.ne.s32.totalorder %s427, %s428
    %p442 = scmp.eq.s32.totalorder %s28, 3
    %p443 = por %p441, %p442
    %p445 = scmp.ne.s32.totalorder %s428, %s444
    %p446 = scmp.eq.s32.totalorder %s28, 0
    %p447 = por %p445, %p446
    %s448 = ssub.s32 %s29, %s41
    %p449 = scmp.eq.s32.totalorder %s448, 0
    %s451 = sadd.s32 %s450, 1
    %s452 = scalar_select %p449, %s450, %s451
    %p455 = pneg %p449
    %p456 = scmp.eq.s32.totalorder %s22, 3
    %p457 = por %p455, %p456
    %p458 = scmp.ne.s32.totalorder %s450, %s453
    %p459 = scmp.eq.s32.totalorder %s22, 0
    %p460 = por %p458, %p459
    %p461 = scmp.ne.s32.totalorder %s450, %s453
    %p462 = scmp.eq.s32.totalorder %s27, 3
    %p463 = por %p461, %p462
    %p464 = scmp.ne.s32.totalorder %s453, %s454
    %p465 = scmp.eq.s32.totalorder %s27, 0
    %p466 = por %p464, %p465
    %p467 = scmp.ne.s32.totalorder %s453, %s454
    %p468 = scmp.eq.s32.totalorder %s28, 3
    %p469 = por %p467, %p468
    %p471 = scmp.ne.s32.totalorder %s454, %s470
    %p472 = scmp.eq.s32.totalorder %s28, 0
    %p473 = por %p471, %p472
    %p474 = scmp.le.s32.totalorder 1, %s22
    %p475 = scmp.lt.s32.totalorder %s22, 5
    %p476 = pnand %p474, %p475
    %p477 = pneg %p476
    // Predicated region
    $region9: #{_lambda_.2} parent=5 // pred_check
      _
    $region10: #{_lambda_.2} parent=5 // pred_check_branch
      %479 = sbr.rel (%p476) target = $region12
    $region11: #{_lambda_.2} parent=5 // pred_region
      %s480 = ssub.s32 %s22, 1
      // Predicated region
      $region13: #{_lambda_.2} parent=11 // pred_check
        %p481 = pneg %p107
      $region14: #{_lambda_.2} parent=11 // pred_check_branch
        %483 = sbr.rel (%p481) target = $region16
      $region15: #{_lambda_.2} parent=11 // pred_region
        _
      $region16: #{_lambda_.2} parent=11 // pred_fallthru
        _
      // Predicated region
      $region17: #{_lambda_.2} parent=11 // pred_check
        %p484 = pneg %p128
      $region18: #{_lambda_.2} parent=11 // pred_check_branch
        %486 = sbr.rel (%p484) target = $region20
      $region19: #{_lambda_.2} parent=11 // pred_region
        _
      $region20: #{_lambda_.2} parent=11 // pred_fallthru
        _
    $region12: #{_lambda_.2} parent=5 // pred_fallthru
      _
    %p487 = scmp.lt.s32.totalorder %s22, 4
    // Predicated region
    $region21: #{_lambda_.2} parent=5 // pred_check
      %p488 = pneg %p487
    $region22: #{_lambda_.2} parent=5 // pred_check_branch
      %490 = sbr.rel (%p488) target = $region24
    $region23: #{_lambda_.2} parent=5 // pred_region
      // Predicated region
      $region25: #{_lambda_.2} parent=23 // pred_check
        %p491 = pneg %p54
      $region26: #{_lambda_.2} parent=23 // pred_check_branch
        %493 = sbr.rel (%p491) target = $region28
      $region27: #{_lambda_.2} parent=23 // pred_region
        %p494 = scmp.lt.s32.totalorder %s29, 1
        %s495 = scalar_select %p494, %s29, 1
        %s496 = smul.addr %s495, 8
        %s497 = scalar_lea.vmem %s0, %s496
      $region28: #{_lambda_.2} parent=23 // pred_fallthru
        _
      // Predicated region
      $region29: #{_lambda_.2} parent=23 // pred_check
        %p498 = pneg %p80
      $region30: #{_lambda_.2} parent=23 // pred_check_branch
        %500 = sbr.rel (%p498) target = $region32
      $region31: #{_lambda_.2} parent=23 // pred_region
        %p501 = scmp.lt.s32.totalorder %s29, 1
        %s502 = scalar_select %p501, %s29, 1
        %s503 = scalar_lea.vmem %s1, %s502
      $region32: #{_lambda_.2} parent=23 // pred_fallthru
        _
      // Predicated region
      $region33: #{_lambda_.2} parent=23 // pred_check
        %p504 = pneg %p148
      $region34: #{_lambda_.2} parent=23 // pred_check_branch
        %506 = sbr.rel (%p504) target = $region36
      $region35: #{_lambda_.2} parent=23 // pred_region
        %p507 = scmp.lt.s32.totalorder %s30, 1
        %s508 = scalar_select %p507, %s30, 1
        %s509 = smul.addr %s508, 4
        %s510 = smul.addr %s509, 4
        %s511 = scalar_lea.vmem %s4, %s510
      $region36: #{_lambda_.2} parent=23 // pred_fallthru
        _
      // Predicated region
      $region37: #{_lambda_.2} parent=23 // pred_check
        %p512 = pneg %p174
      $region38: #{_lambda_.2} parent=23 // pred_check_branch
        %514 = sbr.rel (%p512) target = $region40
      $region39: #{_lambda_.2} parent=23 // pred_region
        %p515 = scmp.lt.s32.totalorder %s30, 1
        %s516 = scalar_select %p515, %s30, 1
        %s517 = scalar_lea.vmem %s5, %s516
      $region40: #{_lambda_.2} parent=23 // pred_fallthru
        _
      // Predicated region
      $region41: #{_lambda_.2} parent=23 // pred_check
        %p518 = pneg %p200
      $region42: #{_lambda_.2} parent=23 // pred_check_branch
        %520 = sbr.rel (%p518) target = $region44
      $region43: #{_lambda_.2} parent=23 // pred_region
        %p521 = scmp.lt.s32.totalorder %s30, 1
        %s522 = scalar_select %p521, %s30, 1
        %s523 = smul.addr %s522, 4
        %s524 = smul.addr %s523, 4
        %s525 = scalar_lea.vmem %s6, %s524
      $region44: #{_lambda_.2} parent=23 // pred_fallthru
        _
      // Predicated region
      $region45: #{_lambda_.2} parent=23 // pred_check
        %p526 = pneg %p226
      $region46: #{_lambda_.2} parent=23 // pred_check_branch
        %528 = sbr.rel (%p526) target = $region48
      $region47: #{_lambda_.2} parent=23 // pred_region
        %p529 = scmp.lt.s32.totalorder %s30, 1
        %s530 = scalar_select %p529, %s30, 1
        %s531 = scalar_lea.vmem %s7, %s530
      $region48: #{_lambda_.2} parent=23 // pred_fallthru
        _
      // Predicated region
      $region49: #{_lambda_.2} parent=23 // pred_check
        %p532 = pneg %p252
      $region50: #{_lambda_.2} parent=23 // pred_check_branch
        %534 = sbr.rel (%p532) target = $region52
      $region51: #{_lambda_.2} parent=23 // pred_region
        %p535 = scmp.lt.s32.totalorder %s30, 1
        %s536 = scalar_select %p535, %s30, 1
        %s537 = scalar_lea.vmem %s8, %s536
      $region52: #{_lambda_.2} parent=23 // pred_fallthru
        _
      // Predicated region
      $region53: #{_lambda_.2} parent=23 // pred_check
        %p538 = pneg %p278
      $region54: #{_lambda_.2} parent=23 // pred_check_branch
        %540 = sbr.rel (%p538) target = $region56
      $region55: #{_lambda_.2} parent=23 // pred_region
        %p541 = scmp.lt.s32.totalorder %s30, 1
        %s542 = scalar_select %p541, %s30, 1
        %s543 = scalar_lea.vmem %s9, %s542
      $region56: #{_lambda_.2} parent=23 // pred_fallthru
        _
      // Predicated region
      $region57: #{_lambda_.2} parent=23 // pred_check
        %p544 = pneg %p304
      $region58: #{_lambda_.2} parent=23 // pred_check_branch
        %546 = sbr.rel (%p544) target = $region60
      $region59: #{_lambda_.2} parent=23 // pred_region
        %p547 = scmp.lt.s32.totalorder %s30, 1
        %s548 = scalar_select %p547, %s30, 1
        %s549 = smul.addr %s548, 4
        %s550 = smul.addr %s549, 4
        %s551 = scalar_lea.vmem %s10, %s550
      $region60: #{_lambda_.2} parent=23 // pred_fallthru
        _
      // Predicated region
      $region61: #{_lambda_.2} parent=23 // pred_check
        %p552 = pneg %p330
      $region62: #{_lambda_.2} parent=23 // pred_check_branch
        %554 = sbr.rel (%p552) target = $region64
      $region63: #{_lambda_.2} parent=23 // pred_region
        %p555 = scmp.lt.s32.totalorder %s30, 1
        %s556 = scalar_select %p555, %s30, 1
        %s557 = scalar_lea.vmem %s11, %s556
      $region64: #{_lambda_.2} parent=23 // pred_fallthru
        _
      // Predicated region
      $region65: #{_lambda_.2} parent=23 // pred_check
        %p558 = pneg %p356
      $region66: #{_lambda_.2} parent=23 // pred_check_branch
        %560 = sbr.rel (%p558) target = $region68
      $region67: #{_lambda_.2} parent=23 // pred_region
        %p561 = scmp.lt.s32.totalorder %s30, 1
        %s562 = scalar_select %p561, %s30, 1
        %s563 = smul.addr %s562, 8
        %s564 = smul.addr %s563, 4
        %s565 = scalar_lea.vmem %s12, %s564
      $region68: #{_lambda_.2} parent=23 // pred_fallthru
        _
      // Predicated region
      $region69: #{_lambda_.2} parent=23 // pred_check
        %p566 = pneg %p382
      $region70: #{_lambda_.2} parent=23 // pred_check_branch
        %568 = sbr.rel (%p566) target = $region72
      $region71: #{_lambda_.2} parent=23 // pred_region
        %p569 = scmp.lt.s32.totalorder %s30, 1
        %s570 = scalar_select %p569, %s30, 1
        %s571 = scalar_lea.vmem %s13, %s570
      $region72: #{_lambda_.2} parent=23 // pred_fallthru
        _
      // Predicated region
      $region73: #{_lambda_.2} parent=23 // pred_check
        %p572 = pneg %p408
      $region74: #{_lambda_.2} parent=23 // pred_check_branch
        %574 = sbr.rel (%p572) target = $region76
      $region75: #{_lambda_.2} parent=23 // pred_region
        %p575 = scmp.lt.s32.totalorder %s30, 1
        %s576 = scalar_select %p575, %s30, 1
        %s577 = scalar_lea.vmem %s14, %s576
      $region76: #{_lambda_.2} parent=23 // pred_fallthru
        _
      // Predicated region
      $region77: #{_lambda_.2} parent=23 // pred_check
        %p578 = pneg %p434
      $region78: #{_lambda_.2} parent=23 // pred_check_branch
        %580 = sbr.rel (%p578) target = $region80
      $region79: #{_lambda_.2} parent=23 // pred_region
        %p581 = scmp.lt.s32.totalorder %s30, 1
        %s582 = scalar_select %p581, %s30, 1
        %s583 = scalar_lea.vmem %s15, %s582
      $region80: #{_lambda_.2} parent=23 // pred_fallthru
        _
    $region24: #{_lambda_.2} parent=5 // pred_fallthru
      _
    %p584 = scmp.le.s32.totalorder 1, %s22
    %p585 = scmp.lt.s32.totalorder %s22, 5
    %p586 = pnand %p584, %p585
    %p587 = pneg %p586
    // Predicated region
    $region81: #{_lambda_.2} parent=5 // pred_check
      _
    $region82: #{_lambda_.2} parent=5 // pred_check_branch
      %589 = sbr.rel (%p586) target = $region84
    $region83: #{_lambda_.2} parent=5 // pred_region
      %s590 = ssub.s32 %s22, 1
      %p591 = scmp.lt.s32.totalorder %s31, 1
      %s592 = scalar_select %p591, %s31, 1
      %s593 = smul.addr %s592, 8
      %s594 = scalar_lea.vmem %s0, %s593
      %p595 = pneg %p60
      %p596 = pneg %p57
      %p597 = scmp.lt.s32.totalorder %s31, 1
      %s598 = scalar_select %p597, %s31, 1
      %s599 = scalar_lea.vmem %s1, %s598
      %p600 = pneg %p86
      %p601 = pneg %p83
      %p602 = pneg %p107
      %p603 = pneg %p104
      %p604 = pneg %p128
      %p605 = pneg %p125
      %p606 = scmp.lt.s32.totalorder %s32, 1
      %s607 = scalar_select %p606, %s32, 1
      %s608 = smul.addr %s607, 4
      %s609 = smul.addr %s608, 4
      %s610 = scalar_lea.vmem %s4, %s609
      %p611 = pneg %p154
      %p612 = pneg %p151
      %p613 = scmp.lt.s32.totalorder %s32, 1
      %s614 = scalar_select %p613, %s32, 1
      %s615 = scalar_lea.vmem %s5, %s614
      %p616 = pneg %p180
      %p617 = pneg %p177
      %p618 = scmp.lt.s32.totalorder %s32, 1
      %s619 = scalar_select %p618, %s32, 1
      %s620 = smul.addr %s619, 4
      %s621 = smul.addr %s620, 4
      %s622 = scalar_lea.vmem %s6, %s621
      %p623 = pneg %p206
      %p624 = pneg %p203
      %p625 = scmp.lt.s32.totalorder %s32, 1
      %s626 = scalar_select %p625, %s32, 1
      %s627 = scalar_lea.vmem %s7, %s626
      %p628 = pneg %p232
      %p629 = pneg %p229
      %p630 = scmp.lt.s32.totalorder %s32, 1
      %s631 = scalar_select %p630, %s32, 1
      %s632 = scalar_lea.vmem %s8, %s631
      %p633 = pneg %p258
      %p634 = pneg %p255
      %p635 = scmp.lt.s32.totalorder %s32, 1
      %s636 = scalar_select %p635, %s32, 1
      %s637 = scalar_lea.vmem %s9, %s636
      %p638 = pneg %p284
      %p639 = pneg %p281
      %p640 = scmp.lt.s32.totalorder %s32, 1
      %s641 = scalar_select %p640, %s32, 1
      %s642 = smul.addr %s641, 4
      %s643 = smul.addr %s642, 4
      %s644 = scalar_lea.vmem %s10, %s643
      %p645 = pneg %p310
      %p646 = pneg %p307
      %p647 = scmp.lt.s32.totalorder %s32, 1
      %s648 = scalar_select %p647, %s32, 1
      %s649 = scalar_lea.vmem %s11, %s648
      %p650 = pneg %p336
      %p651 = pneg %p333
      %p652 = scmp.lt.s32.totalorder %s32, 1
      %s653 = scalar_select %p652, %s32, 1
      %s654 = smul.addr %s653, 8
      %s655 = smul.addr %s654, 4
      %s656 = scalar_lea.vmem %s12, %s655
      %p657 = pneg %p362
      %p658 = pneg %p359
      %p659 = scmp.lt.s32.totalorder %s32, 1
      %s660 = scalar_select %p659, %s32, 1
      %s661 = scalar_lea.vmem %s13, %s660
      %p662 = pneg %p388
      %p663 = pneg %p385
      %p664 = scmp.lt.s32.totalorder %s32, 1
      %s665 = scalar_select %p664, %s32, 1
      %s666 = scalar_lea.vmem %s14, %s665
      %p667 = pneg %p414
      %p668 = pneg %p411
      %p669 = scmp.lt.s32.totalorder %s32, 1
      %s670 = scalar_select %p669, %s32, 1
      %s671 = scalar_lea.vmem %s15, %s670
      %p672 = pneg %p440
      %p673 = pneg %p437
      %p674 = pneg %p466
      %p675 = pneg %p463
      %p676 = scmp.lt.s32.totalorder %s31, 1
      %s677 = scalar_select %p676, %s31, 1
      %s678 = smul.addr %s677, 8
      %s679 = scalar_lea.vmem %s16, %s678
      %p680 = scmp.lt.s32.totalorder %s31, 1
      %s681 = scalar_select %p680, %s31, 1
      %s682 = smul.addr %s681, 8
      %s683 = scalar_lea.vmem %s0, %s682
      %p684 = scmp.lt.s32.totalorder %s31, 1
      %s685 = scalar_select %p684, %s31, 1
      %s686 = scalar_lea.vmem %s1, %s685
      %p687 = scmp.lt.s32.totalorder %s32, 1
      %s688 = scalar_select %p687, %s32, 1
      %s689 = smul.addr %s688, 4
      %s690 = smul.addr %s689, 4
      %s691 = scalar_lea.vmem %s4, %s690
      %p692 = scmp.lt.s32.totalorder %s32, 1
      %s693 = scalar_select %p692, %s32, 1
      %s694 = scalar_lea.vmem %s5, %s693
      %p695 = scmp.lt.s32.totalorder %s32, 1
      %s696 = scalar_select %p695, %s32, 1
      %s697 = smul.addr %s696, 4
      %s698 = smul.addr %s697, 4
      %s699 = scalar_lea.vmem %s6, %s698
      %p700 = scmp.lt.s32.totalorder %s32, 1
      %s701 = scalar_select %p700, %s32, 1
      %s702 = scalar_lea.vmem %s7, %s701
      %p703 = scmp.lt.s32.totalorder %s32, 1
      %s704 = scalar_select %p703, %s32, 1
      %s705 = scalar_lea.vmem %s8, %s704
      %p706 = scmp.lt.s32.totalorder %s32, 1
      %s707 = scalar_select %p706, %s32, 1
      %s708 = scalar_lea.vmem %s9, %s707
      %p709 = scmp.lt.s32.totalorder %s32, 1
      %s710 = scalar_select %p709, %s32, 1
      %s711 = smul.addr %s710, 4
      %s712 = smul.addr %s711, 4
      %s713 = scalar_lea.vmem %s10, %s712
      %p714 = scmp.lt.s32.totalorder %s32, 1
      %s715 = scalar_select %p714, %s32, 1
      %s716 = scalar_lea.vmem %s11, %s715
      %p717 = scmp.lt.s32.totalorder %s32, 1
      %s718 = scalar_select %p717, %s32, 1
      %s719 = smul.addr %s718, 8
      %s720 = smul.addr %s719, 4
      %s721 = scalar_lea.vmem %s12, %s720
      %p722 = scmp.lt.s32.totalorder %s32, 1
      %s723 = scalar_select %p722, %s32, 1
      %s724 = scalar_lea.vmem %s13, %s723
      %p725 = scmp.lt.s32.totalorder %s32, 1
      %s726 = scalar_select %p725, %s32, 1
      %s727 = scalar_lea.vmem %s14, %s726
      %p728 = scmp.lt.s32.totalorder %s32, 1
      %s729 = scalar_select %p728, %s32, 1
      %s730 = scalar_lea.vmem %s15, %s729
      %p731 = scmp.lt.s32.totalorder %s31, 1
      %s732 = scalar_select %p731, %s31, 1
      %s733 = smul.addr %s732, 8
      %s734 = scalar_lea.vmem %s16, %s733
      %p736 = scmp.eq.s32.totalorder %s32, 0
      // Predicated region
      $region85: #{_lambda_.2} parent=83 // pred_check
        %p737 = pneg %p736
      $region86: #{_lambda_.2} parent=83 // pred_check_branch
        %739 = sbr.rel (%p737) target = $region88
      $region87: #{_lambda_.2} parent=83 // pred_region
        %v740 = vld [vmem:[%s683] sm:$0xff]
        %v741 = vld [vmem:[%s2] sm:$0x1]
        %v742 = vld [vmem:[%s3] sm:$0x1]
        %vm743 = vcmask 261120
        %v744 = vsel %vm743, %v740, 0.0
        %745 = vadd.xlane.f32.xlu0 %v744
        %v746 = vpop.xlane.xlu0 %745
        %v747 = vrcp.pop 32.0
        %v748 = vmul.f32 %v746, %v747
        %v749 = vsub.f32 %v740, %v748
        %v750 = vmul.f32 %v749, %v749
        %v751 = vsel %vm743, %v750, 0.0
        %752 = vadd.xlane.f32.xlu0 %v751
        %v753 = vpop.xlane.xlu0 %752
        %v754 = vmul.f32 %v753, %v747
        %v755 = vadd.f32 %v754, 1e-12
        %v756 = vrsqrt.pop %v755
        %v757 = vmul.f32 %v749, %v756
        %v759 = vlaneseq
        %v760 = vshrl.u32 %v759, 7
        %v761 = vsub.s32 0, %v760
        %v762 = vrot.slane %v741, %v761
        %v764 = vmul.f32 %v757, %v762
        %v766 = vlaneseq
        %v767 = vshrl.u32 %v766, 7
        %v768 = vsub.s32 0, %v767
        %v769 = vrot.slane %v742, %v768
        %v771 = vadd.f32 %v764, %v769
        %772 = vst.msk [vmem:[#allocation2] sm:$0xff] %vm743, %v771
      $region88: #{_lambda_.2} parent=83 // pred_fallthru
        _
      %v773 = vld [vmem:[#allocation2] sm:$0xff]
      %v774 = vpack.c.bf16 %v773, %v773
      %v775 = vld [vmem:[%s691] sm:$0xf]
      %v776 = vld [vmem:[%s691 + $0x4] sm:$0xf]
      %v777 = vld [vmem:[%s691 + $0x8] sm:$0xf]
      %v778 = vld [vmem:[%s691 + $0xc] sm:$0xf]
      %v779 = vld [vmem:[%s694] sm:$0x1]
      %v781 = vlaneseq
      %v782 = vshrl.u32 %v781, 7
      %v783 = vsub.s32 0, %v782
      %v784 = vrot.slane %v779, %v783
      %v790 = vunpack.c.l.b16 %v775
      %v791 = vunpack.c.l.b16 %v776
      %v792 = vunpack.c.l.b16 %v777
      %v793 = vunpack.c.l.b16 %v778
      %v794 = vpack.c.b16 %v791, %v790
      %v795 = vpack.c.b16 %v793, %v792
      %vm798 = vcmask 261120
      %v800 = vsel %vm798, %v774, 0
      %802 = vmatprep.subr.bf16.mxu0 0
      %803 = vmatpush1.bf16.msra.mxu0 %v794
      %804 = vmatprep.subr.bf16.mxu0 0
      %805 = vmatpush1.bf16.msra.mxu0 %v795
      %806 = vmatprep.subr.bf16.mxu0 0
      %807 = vmatpush1.bf16.msra.mxu0 0
      %808 = vmatprep.subr.bf16.mxu0 0
      %809 = vmatpush1.bf16.msra.mxu0 0
      %810 = vmatprep.subr.bf16.mxu0 0
      %811 = vmatpush1.bf16.msra.mxu0 0
      %812 = vmatprep.subr.bf16.mxu0 0
      %813 = vmatpush1.bf16.msra.mxu0 0
      %814 = vmatprep.subr.bf16.mxu0 0
      %815 = vmatpush1.bf16.msra.mxu0 0
      %816 = vmatprep.subr.bf16.mxu0 0
      %817 = vmatpush1.bf16.msra.mxu0 0
      %818 = vmatprep.subr.bf16.mxu0 0
      %819 = vmatpush1.bf16.msra.mxu0 0
      %820 = vmatprep.subr.bf16.mxu0 0
      %821 = vmatpush1.bf16.msra.mxu0 0
      %822 = vmatprep.subr.bf16.mxu0 0
      %823 = vmatpush1.bf16.msra.mxu0 0
      %824 = vmatprep.subr.bf16.mxu0 0
      %825 = vmatpush1.bf16.msra.mxu0 0
      %826 = vmatprep.subr.bf16.mxu0 0
      %827 = vmatpush1.bf16.msra.mxu0 0
      %828 = vmatprep.subr.bf16.mxu0 0
      %829 = vmatpush1.bf16.msra.mxu0 0
      %830 = vmatprep.subr.bf16.mxu0 0
      %831 = vmatpush1.bf16.msra.mxu0 0
      %832 = vmatprep.subr.bf16.mxu0 0
      %833 = vmatpush1.bf16.msra.mxu0 0
      %834 = vmatprep.mubr.bf16.mxu0 0
      %835 = vmatmul.mubr.bf16.gmra.mrb[0].mxu0 %v800
      %v836 = vpop.f32.mrb[0].mxu0
      %v837 = vadd.f32 %v784, %v836
      %v838 = vpop.f32.mrb[0].mxu0
      %v839 = vpop.f32.mrb[0].mxu0
      %v840 = vpop.f32.mrb[0].mxu0
      %841 = vdwg.mxu0
      %843 = vrot.lane.b32.xlu0 %v837, 112
      %v844 = vpop.permute.xlu0 %843
      %v846 = vcombine.high %v837, 0.0
      %v848 = vunpack.c.l.s4 1983009808
      %v849 = vunpack.c.0.s8 %v848
      %v850 = vlaneseq
      %v851 = vshrl.u32 %v850, 7
      %v852 = vsub.s32 %v849, %v851
      %v853 = vrot.slane %v837, %v852
      %v855 = vunpack.c.l.s4 1983009808
      %v856 = vunpack.c.0.s8 %v855
      %v857 = vlaneseq
      %v858 = vshrl.u32 %v857, 7
      %v859 = vsub.s32 %v856, %v858
      %v860 = vrot.slane %v846, %v859
      %v861 = vcombine.high %v844, 0.0
      %v863 = vunpack.c.l.s4 1983009808
      %v864 = vunpack.c.0.s8 %v863
      %v865 = vlaneseq
      %v866 = vshrl.u32 %v865, 7
      %v867 = vsub.s32 %v864, %v866
      %v868 = vrot.slane %v844, %v867
      %v870 = vunpack.c.l.s4 1983009808
      %v871 = vunpack.c.0.s8 %v870
      %v872 = vlaneseq
      %v873 = vshrl.u32 %v872, 7
      %v874 = vsub.s32 %v871, %v873
      %v875 = vrot.slane %v861, %v874
      %v876 = vcombine.low %v853, %v868
      %v877 = vcombine.high %v853, %v868
      %v879 = vunpack.c.l.s4 1934713408
      %v880 = vunpack.c.0.s8 %v879
      %v881 = vlaneseq
      %v882 = vshrl.u32 %v881, 7
      %v883 = vsub.s32 %v880, %v882
      %v884 = vrot.slane %v876, %v883
      %v886 = vunpack.c.l.s4 1934713408
      %v887 = vunpack.c.0.s8 %v886
      %v888 = vlaneseq
      %v889 = vshrl.u32 %v888, 7
      %v890 = vsub.s32 %v887, %v889
      %v891 = vrot.slane %v877, %v890
      %v892 = vcombine.low %v860, %v875
      %v893 = vcombine.high %v860, %v875
      %v895 = vunpack.c.l.s4 1934713408
      %v896 = vunpack.c.0.s8 %v895
      %v897 = vlaneseq
      %v898 = vshrl.u32 %v897, 7
      %v899 = vsub.s32 %v896, %v898
      %v900 = vrot.slane %v892, %v899
      %v902 = vunpack.c.l.s4 1934713408
      %v903 = vunpack.c.0.s8 %v902
      %v904 = vlaneseq
      %v905 = vshrl.u32 %v904, 7
      %v906 = vsub.s32 %v903, %v905
      %v907 = vrot.slane %v893, %v906
      %v908 = vcombine.high %v884, 0.0
      %v909 = vcombine.high %v891, 0.0
      %v910 = vcombine.high %v900, 0.0
      %v911 = vcombine.high %v907, 0.0
      %v912 = vcombine.low %v884, %v891
      %v914 = vunpack.c.l.s4 1983009808
      %v915 = vunpack.c.0.s8 %v914
      %v916 = vlaneseq
      %v917 = vshrl.u32 %v916, 7
      %v918 = vsub.s32 %v915, %v917
      %v919 = vrot.slane %v912, %v918
      %v920 = vcombine.low %v908, %v909
      %v922 = vunpack.c.l.s4 1983009808
      %v923 = vunpack.c.0.s8 %v922
      %v924 = vlaneseq
      %v925 = vshrl.u32 %v924, 7
      %v926 = vsub.s32 %v923, %v925
      %v927 = vrot.slane %v920, %v926
      %v928 = vcombine.low %v900, %v907
      %v930 = vunpack.c.l.s4 1983009808
      %v931 = vunpack.c.0.s8 %v930
      %v932 = vlaneseq
      %v933 = vshrl.u32 %v932, 7
      %v934 = vsub.s32 %v931, %v933
      %v935 = vrot.slane %v928, %v934
      %v936 = vcombine.low %v910, %v911
      %v938 = vunpack.c.l.s4 1983009808
      %v939 = vunpack.c.0.s8 %v938
      %v940 = vlaneseq
      %v941 = vshrl.u32 %v940, 7
      %v942 = vsub.s32 %v939, %v941
      %v943 = vrot.slane %v936, %v942
      %v944 = vcombine.low %v919, %v927
      %v946 = vunpack.c.l.s4 1934713408
      %v947 = vunpack.c.0.s8 %v946
      %v948 = vlaneseq
      %v949 = vshrl.u32 %v948, 7
      %v950 = vsub.s32 %v947, %v949
      %v951 = vrot.slane %v944, %v950
      %v952 = vcombine.low %v935, %v943
      %v954 = vunpack.c.l.s4 1934713408
      %v955 = vunpack.c.0.s8 %v954
      %v956 = vlaneseq
      %v957 = vshrl.u32 %v956, 7
      %v958 = vsub.s32 %v955, %v957
      %v959 = vrot.slane %v952, %v958
      %v960 = vcombine.low %v951, %v959
      %v961 = vcombine.high %v951, %v959
      %v962 = vpack.c.bf16 %v960, %v960
      %v963 = vpack.c.bf16 %v961, %v961
      %964 = vrot.lane.b32.xlu0 %v837, 96
      %v965 = vpop.permute.xlu0 %964
      %966 = vrot.lane.b32.xlu0 %v844, 96
      %v967 = vpop.permute.xlu0 %966
      %v970 = vcombine.high %v965, 0.0
      %v972 = vunpack.c.l.s4 1983009808
      %v973 = vunpack.c.0.s8 %v972
      %v974 = vlaneseq
      %v975 = vshrl.u32 %v974, 7
      %v976 = vsub.s32 %v973, %v975
      %v977 = vrot.slane %v965, %v976
      %v979 = vunpack.c.l.s4 1983009808
      %v980 = vunpack.c.0.s8 %v979
      %v981 = vlaneseq
      %v982 = vshrl.u32 %v981, 7
      %v983 = vsub.s32 %v980, %v982
      %v984 = vrot.slane %v970, %v983
      %v985 = vcombine.high %v967, 0.0
      %v987 = vunpack.c.l.s4 1983009808
      %v988 = vunpack.c.0.s8 %v987
      %v989 = vlaneseq
      %v990 = vshrl.u32 %v989, 7
      %v991 = vsub.s32 %v988, %v990
      %v992 = vrot.slane %v967, %v991
      %v994 = vunpack.c.l.s4 1983009808
      %v995 = vunpack.c.0.s8 %v994
      %v996 = vlaneseq
      %v997 = vshrl.u32 %v996, 7
      %v998 = vsub.s32 %v995, %v997
      %v999 = vrot.slane %v985, %v998
      %v1000 = vcombine.low %v977, %v992
      %v1001 = vcombine.high %v977, %v992
      %v1003 = vunpack.c.l.s4 1934713408
      %v1004 = vunpack.c.0.s8 %v1003
      %v1005 = vlaneseq
      %v1006 = vshrl.u32 %v1005, 7
      %v1007 = vsub.s32 %v1004, %v1006
      %v1008 = vrot.slane %v1000, %v1007
      %v1010 = vunpack.c.l.s4 1934713408
      %v1011 = vunpack.c.0.s8 %v1010
      %v1012 = vlaneseq
      %v1013 = vshrl.u32 %v1012, 7
      %v1014 = vsub.s32 %v1011, %v1013
      %v1015 = vrot.slane %v1001, %v1014
      %v1016 = vcombine.low %v984, %v999
      %v1017 = vcombine.high %v984, %v999
      %v1019 = vunpack.c.l.s4 1934713408
      %v1020 = vunpack.c.0.s8 %v1019
      %v1021 = vlaneseq
      %v1022 = vshrl.u32 %v1021, 7
      %v1023 = vsub.s32 %v1020, %v1022
      %v1024 = vrot.slane %v1016, %v1023
      %v1026 = vunpack.c.l.s4 1934713408
      %v1027 = vunpack.c.0.s8 %v1026
      %v1028 = vlaneseq
      %v1029 = vshrl.u32 %v1028, 7
      %v1030 = vsub.s32 %v1027, %v1029
      %v1031 = vrot.slane %v1017, %v1030
      %v1032 = vcombine.high %v1008, 0.0
      %v1033 = vcombine.high %v1015, 0.0
      %v1034 = vcombine.high %v1024, 0.0
      %v1035 = vcombine.high %v1031, 0.0
      %v1036 = vcombine.low %v1008, %v1015
      %v1038 = vunpack.c.l.s4 1983009808
      %v1039 = vunpack.c.0.s8 %v1038
      %v1040 = vlaneseq
      %v1041 = vshrl.u32 %v1040, 7
      %v1042 = vsub.s32 %v1039, %v1041
      %v1043 = vrot.slane %v1036, %v1042
      %v1044 = vcombine.low %v1032, %v1033
      %v1046 = vunpack.c.l.s4 1983009808
      %v1047 = vunpack.c.0.s8 %v1046
      %v1048 = vlaneseq
      %v1049 = vshrl.u32 %v1048, 7
      %v1050 = vsub.s32 %v1047, %v1049
      %v1051 = vrot.slane %v1044, %v1050
      %v1052 = vcombine.low %v1024, %v1031
      %v1054 = vunpack.c.l.s4 1983009808
      %v1055 = vunpack.c.0.s8 %v1054
      %v1056 = vlaneseq
      %v1057 = vshrl.u32 %v1056, 7
      %v1058 = vsub.s32 %v1055, %v1057
      %v1059 = vrot.slane %v1052, %v1058
      %v1060 = vcombine.low %v1034, %v1035
      %v1062 = vunpack.c.l.s4 1983009808
      %v1063 = vunpack.c.0.s8 %v1062
      %v1064 = vlaneseq
      %v1065 = vshrl.u32 %v1064, 7
      %v1066 = vsub.s32 %v1063, %v1065
      %v1067 = vrot.slane %v1060, %v1066
      %v1068 = vcombine.low %v1043, %v1051
      %v1070 = vunpack.c.l.s4 1934713408
      %v1071 = vunpack.c.0.s8 %v1070
      %v1072 = vlaneseq
      %v1073 = vshrl.u32 %v1072, 7
      %v1074 = vsub.s32 %v1071, %v1073
      %v1075 = vrot.slane %v1068, %v1074
      %v1076 = vcombine.low %v1059, %v1067
      %v1078 = vunpack.c.l.s4 1934713408
      %v1079 = vunpack.c.0.s8 %v1078
      %v1080 = vlaneseq
      %v1081 = vshrl.u32 %v1080, 7
      %v1082 = vsub.s32 %v1079, %v1081
      %v1083 = vrot.slane %v1076, %v1082
      %v1084 = vcombine.low %v1075, %v1083
      %v1085 = vcombine.high %v1075, %v1083
      %v1086 = vpack.c.bf16 %v1084, %v1084
      %v1087 = vpack.c.bf16 %v1085, %v1085
      %1088 = vrot.lane.b32.xlu0 %v837, 64
      %v1089 = vpop.permute.xlu0 %1088
      %1090 = vrot.lane.b32.xlu0 %v844, 64
      %v1091 = vpop.permute.xlu0 %1090
      %v1094 = vcombine.high %v1089, 0.0
      %v1096 = vunpack.c.l.s4 1983009808
      %v1097 = vunpack.c.0.s8 %v1096
      %v1098 = vlaneseq
      %v1099 = vshrl.u32 %v1098, 7
      %v1100 = vsub.s32 %v1097, %v1099
      %v1101 = vrot.slane %v1089, %v1100
      %v1103 = vunpack.c.l.s4 1983009808
      %v1104 = vunpack.c.0.s8 %v1103
      %v1105 = vlaneseq
      %v1106 = vshrl.u32 %v1105, 7
      %v1107 = vsub.s32 %v1104, %v1106
      %v1108 = vrot.slane %v1094, %v1107
      %v1109 = vcombine.high %v1091, 0.0
      %v1111 = vunpack.c.l.s4 1983009808
      %v1112 = vunpack.c.0.s8 %v1111
      %v1113 = vlaneseq
      %v1114 = vshrl.u32 %v1113, 7
      %v1115 = vsub.s32 %v1112, %v1114
      %v1116 = vrot.slane %v1091, %v1115
      %v1118 = vunpack.c.l.s4 1983009808
      %v1119 = vunpack.c.0.s8 %v1118
      %v1120 = vlaneseq
      %v1121 = vshrl.u32 %v1120, 7
      %v1122 = vsub.s32 %v1119, %v1121
      %v1123 = vrot.slane %v1109, %v1122
      %v1124 = vcombine.low %v1101, %v1116
      %v1125 = vcombine.high %v1101, %v1116
      %v1127 = vunpack.c.l.s4 1934713408
      %v1128 = vunpack.c.0.s8 %v1127
      %v1129 = vlaneseq
      %v1130 = vshrl.u32 %v1129, 7
      %v1131 = vsub.s32 %v1128, %v1130
      %v1132 = vrot.slane %v1124, %v1131
      %v1134 = vunpack.c.l.s4 1934713408
      %v1135 = vunpack.c.0.s8 %v1134
      %v1136 = vlaneseq
      %v1137 = vshrl.u32 %v1136, 7
      %v1138 = vsub.s32 %v1135, %v1137
      %v1139 = vrot.slane %v1125, %v1138
      %v1140 = vcombine.low %v1108, %v1123
      %v1141 = vcombine.high %v1108, %v1123
      %v1143 = vunpack.c.l.s4 1934713408
      %v1144 = vunpack.c.0.s8 %v1143
      %v1145 = vlaneseq
      %v1146 = vshrl.u32 %v1145, 7
      %v1147 = vsub.s32 %v1144, %v1146
      %v1148 = vrot.slane %v1140, %v1147
      %v1150 = vunpack.c.l.s4 1934713408
      %v1151 = vunpack.c.0.s8 %v1150
      %v1152 = vlaneseq
      %v1153 = vshrl.u32 %v1152, 7
      %v1154 = vsub.s32 %v1151, %v1153
      %v1155 = vrot.slane %v1141, %v1154
      %v1156 = vcombine.high %v1132, 0.0
      %v1157 = vcombine.high %v1139, 0.0
      %v1158 = vcombine.high %v1148, 0.0
      %v1159 = vcombine.high %v1155, 0.0
      %v1160 = vcombine.low %v1132, %v1139
      %v1162 = vunpack.c.l.s4 1983009808
      %v1163 = vunpack.c.0.s8 %v1162
      %v1164 = vlaneseq
      %v1165 = vshrl.u32 %v1164, 7
      %v1166 = vsub.s32 %v1163, %v1165
      %v1167 = vrot.slane %v1160, %v1166
      %v1168 = vcombine.low %v1156, %v1157
      %v1170 = vunpack.c.l.s4 1983009808
      %v1171 = vunpack.c.0.s8 %v1170
      %v1172 = vlaneseq
      %v1173 = vshrl.u32 %v1172, 7
      %v1174 = vsub.s32 %v1171, %v1173
      %v1175 = vrot.slane %v1168, %v1174
      %v1176 = vcombine.low %v1148, %v1155
      %v1178 = vunpack.c.l.s4 1983009808
      %v1179 = vunpack.c.0.s8 %v1178
      %v1180 = vlaneseq
      %v1181 = vshrl.u32 %v1180, 7
      %v1182 = vsub.s32 %v1179, %v1181
      %v1183 = vrot.slane %v1176, %v1182
      %v1184 = vcombine.low %v1158, %v1159
      %v1186 = vunpack.c.l.s4 1983009808
      %v1187 = vunpack.c.0.s8 %v1186
      %v1188 = vlaneseq
      %v1189 = vshrl.u32 %v1188, 7
      %v1190 = vsub.s32 %v1187, %v1189
      %v1191 = vrot.slane %v1184, %v1190
      %v1192 = vcombine.low %v1167, %v1175
      %v1194 = vunpack.c.l.s4 1934713408
      %v1195 = vunpack.c.0.s8 %v1194
      %v1196 = vlaneseq
      %v1197 = vshrl.u32 %v1196, 7
      %v1198 = vsub.s32 %v1195, %v1197
      %v1199 = vrot.slane %v1192, %v1198
      %v1200 = vcombine.low %v1183, %v1191
      %v1202 = vunpack.c.l.s4 1934713408
      %v1203 = vunpack.c.0.s8 %v1202
      %v1204 = vlaneseq
      %v1205 = vshrl.u32 %v1204, 7
      %v1206 = vsub.s32 %v1203, %v1205
      %v1207 = vrot.slane %v1200, %v1206
      %v1208 = vcombine.low %v1199, %v1207
      %v1209 = vcombine.high %v1199, %v1207
      %v1210 = vpack.c.bf16 %v1208, %v1208
      %v1211 = vpack.c.bf16 %v1209, %v1209
      %v1212 = vld [vmem:[%s686] sm:$0x1]
      %v1214 = vlaneseq
      %v1215 = vshrl.u32 %v1214, 7
      %v1216 = vsub.s32 0, %v1215
      %v1217 = vrot.slane %v1212, %v1216
      %vm1219 = vcmask 130048
      %v1221 = vsel %vm1219, %v962, 0
      %v1224 = vsel %vm1219, %v1086, 0
      %1226 = vmatprep.subr.bf16.mxu0 0
      %1227 = vmatpush1.bf16.xpose.msra.mxu0 %v1224
      %1228 = vmatprep.subr.bf16.mxu0 0
      %1229 = vmatpush1.bf16.xpose.msra.mxu0 0
      %1230 = vmatprep.subr.bf16.mxu0 0
      %1231 = vmatpush1.bf16.xpose.msra.mxu0 0
      %1232 = vmatprep.subr.bf16.mxu0 0
      %1233 = vmatpush1.bf16.xpose.msra.mxu0 0
      %1234 = vmatprep.subr.bf16.mxu0 0
      %1235 = vmatpush1.bf16.xpose.msra.mxu0 0
      %1236 = vmatprep.subr.bf16.mxu0 0
      %1237 = vmatpush1.bf16.xpose.msra.mxu0 0
      %1238 = vmatprep.subr.bf16.mxu0 0
      %1239 = vmatpush1.bf16.xpose.msra.mxu0 0
      %1240 = vmatprep.subr.bf16.mxu0 0
      %1241 = vmatpush1.bf16.xpose.msra.mxu0 0
      %1242 = vmatprep.subr.bf16.mxu0 0
      %1243 = vmatpush1.bf16.xpose.msra.mxu0 0
      %1244 = vmatprep.subr.bf16.mxu0 0
      %1245 = vmatpush1.bf16.xpose.msra.mxu0 0
      %1246 = vmatprep.subr.bf16.mxu0 0
      %1247 = vmatpush1.bf16.xpose.msra.mxu0 0
      %1248 = vmatprep.subr.bf16.mxu0 0
      %1249 = vmatpush1.bf16.xpose.msra.mxu0 0
      %1250 = vmatprep.subr.bf16.mxu0 0
      %1251 = vmatpush1.bf16.xpose.msra.mxu0 0
      %1252 = vmatprep.subr.bf16.mxu0 0
      %1253 = vmatpush1.bf16.xpose.msra.mxu0 0
      %1254 = vmatprep.subr.bf16.mxu0 0
      %1255 = vmatpush1.bf16.xpose.msra.mxu0 0
      %1256 = vmatprep.subr.bf16.mxu0 0
      %1257 = vmatpush1.bf16.xpose.msra.mxu0 0
      %1258 = vmatprep.mubr.bf16.mxu0 0
      %1259 = vmatmul.mubr.bf16.gmra.mrb[0].mxu0 %v1221
      %v1260 = vpop.f32.mrb[0].mxu0
      %v1261 = vadd.f32 %v1217, %v1260
      %v1262 = vpop.f32.mrb[0].mxu0
      %v1263 = vpop.f32.mrb[0].mxu0
      %v1264 = vpop.f32.mrb[0].mxu0
      %1265 = vdwg.mxu0
      %v1267 = vsel %vm1219, %v963, 0
      %v1270 = vsel %vm1219, %v1087, 0
      %1272 = vmatprep.subr.bf16.mxu0 0
      %1273 = vmatpush1.bf16.xpose.msra.mxu0 %v1270
      %1274 = vmatprep.subr.bf16.mxu0 0
      %1275 = vmatpush1.bf16.xpose.msra.mxu0 0
      %1276 = vmatprep.subr.bf16.mxu0 0
      %1277 = vmatpush1.bf16.xpose.msra.mxu0 0
      %1278 = vmatprep.subr.bf16.mxu0 0
      %1279 = vmatpush1.bf16.xpose.msra.mxu0 0
      %1280 = vmatprep.subr.bf16.mxu0 0
      %1281 = vmatpush1.bf16.xpose.msra.mxu0 0
      %1282 = vmatprep.subr.bf16.mxu0 0
      %1283 = vmatpush1.bf16.xpose.msra.mxu0 0
      %1284 = vmatprep.subr.bf16.mxu0 0
      %1285 = vmatpush1.bf16.xpose.msra.mxu0 0
      %1286 = vmatprep.subr.bf16.mxu0 0
      %1287 = vmatpush1.bf16.xpose.msra.mxu0 0
      %1288 = vmatprep.subr.bf16.mxu0 0
      %1289 = vmatpush1.bf16.xpose.msra.mxu0 0
      %1290 = vmatprep.subr.bf16.mxu0 0
      %1291 = vmatpush1.bf16.xpose.msra.mxu0 0
      %1292 = vmatprep.subr.bf16.mxu0 0
      %1293 = vmatpush1.bf16.xpose.msra.mxu0 0
      %1294 = vmatprep.subr.bf16.mxu0 0
      %1295 = vmatpush1.bf16.xpose.msra.mxu0 0
      %1296 = vmatprep.subr.bf16.mxu0 0
      %1297 = vmatpush1.bf16.xpose.msra.mxu0 0
      %1298 = vmatprep.subr.bf16.mxu0 0
      %1299 = vmatpush1.bf16.xpose.msra.mxu0 0
      %1300 = vmatprep.subr.bf16.mxu0 0
      %1301 = vmatpush1.bf16.xpose.msra.mxu0 0
      %1302 = vmatprep.subr.bf16.mxu0 0
      %1303 = vmatpush1.bf16.xpose.msra.mxu0 0
      %1304 = vmatprep.mubr.bf16.mxu0 0
      %1305 = vmatmul.mubr.bf16.gmra.mrb[0].mxu0 %v1267
      %v1306 = vpop.f32.mrb[0].mxu0
      %v1307 = vadd.f32 %v1217, %v1306
      %v1308 = vpop.f32.mrb[0].mxu0
      %v1309 = vpop.f32.mrb[0].mxu0
      %v1310 = vpop.f32.mrb[0].mxu0
      %1311 = vdwg.mxu0
      %vm1312 = vcmask 64512
      %v1313 = vsel %vm1312, %v1261, -inf
      %1314 = vmax.xlane.f32.xlu0 %v1313
      %v1315 = vpop.xlane.xlu0 %1314
      %v1316 = vsel %vm1312, %v1307, -inf
      %1317 = vmax.xlane.f32.xlu0 %v1316
      %v1318 = vpop.xlane.xlu0 %1317
      %v1319 = vsub.f32 %v1261, %v1315
      %v1320 = vsub.f32 %v1307, %v1318
      %v1321 = vmul.f32 %v1319, 1.442695
      %v1322 = vpow.pop %v1321
      %v1323 = vmul.f32 %v1320, 1.442695
      %v1324 = vpow.pop %v1323
      %v1325 = vsel %vm1312, %v1322, 0.0
      %1326 = vadd.xlane.f32.xlu0 %v1325
      %v1327 = vpop.xlane.xlu0 %1326
      %v1328 = vsel %vm1312, %v1324, 0.0
      %1329 = vadd.xlane.f32.xlu0 %v1328
      %v1330 = vpop.xlane.xlu0 %1329
      %v1331 = vrcp.pop %v1327
      %v1332 = vrcp.pop %v1330
      %v1333 = vmul.f32 %v1322, %v1331
      %v1334 = vmul.f32 %v1324, %v1332
      %v1335 = vpack.c.bf16 %v1333, %v1333
      %v1336 = vpack.c.bf16 %v1334, %v1334
      %v1338 = vsel %vm1312, %v1335, 0
      %vm1340 = vcmask 1043456
      %v1342 = vsel %vm1340, %v1210, 0
      %1344 = vmatprep.subr.bf16.mxu0 0
      %1345 = vmatpush1.bf16.msra.mxu0 %v1342
      %1346 = vmatprep.subr.bf16.mxu0 0
      %1347 = vmatpush1.bf16.msra.mxu0 0
      %1348 = vmatprep.subr.bf16.mxu0 0
      %1349 = vmatpush1.bf16.msra.mxu0 0
      %1350 = vmatprep.subr.bf16.mxu0 0
      %1351 = vmatpush1.bf16.msra.mxu0 0
      %1352 = vmatprep.subr.bf16.mxu0 0
      %1353 = vmatpush1.bf16.msra.mxu0 0
      %1354 = vmatprep.subr.bf16.mxu0 0
      %1355 = vmatpush1.bf16.msra.mxu0 0
      %1356 = vmatprep.subr.bf16.mxu0 0
      %1357 = vmatpush1.bf16.msra.mxu0 0
      %1358 = vmatprep.subr.bf16.mxu0 0
      %1359 = vmatpush1.bf16.msra.mxu0 0
      %1360 = vmatprep.subr.bf16.mxu0 0
      %1361 = vmatpush1.bf16.msra.mxu0 0
      %1362 = vmatprep.subr.bf16.mxu0 0
      %1363 = vmatpush1.bf16.msra.mxu0 0
      %1364 = vmatprep.subr.bf16.mxu0 0
      %1365 = vmatpush1.bf16.msra.mxu0 0
      %1366 = vmatprep.subr.bf16.mxu0 0
      %1367 = vmatpush1.bf16.msra.mxu0 0
      %1368 = vmatprep.subr.bf16.mxu0 0
      %1369 = vmatpush1.bf16.msra.mxu0 0
      %1370 = vmatprep.subr.bf16.mxu0 0
      %1371 = vmatpush1.bf16.msra.mxu0 0
      %1372 = vmatprep.subr.bf16.mxu0 0
      %1373 = vmatpush1.bf16.msra.mxu0 0
      %1374 = vmatprep.subr.bf16.mxu0 0
      %1375 = vmatpush1.bf16.msra.mxu0 0
      %1376 = vmatprep.mubr.bf16.mxu0 0
      %1377 = vmatmul.mubr.bf16.gmra.mrb[0].mxu0 %v1338
      %v1378 = vpop.f32.mrb[0].mxu0
      %v1379 = vadd.f32 0.0, %v1378
      %v1380 = vpop.f32.mrb[0].mxu0
      %v1381 = vpop.f32.mrb[0].mxu0
      %v1382 = vpop.f32.mrb[0].mxu0
      %1383 = vdwg.mxu0
      %v1385 = vsel %vm1312, %v1336, 0
      %v1388 = vsel %vm1340, %v1211, 0
      %1390 = vmatprep.subr.bf16.mxu0 0
      %1391 = vmatpush1.bf16.msra.mxu0 %v1388
      %1392 = vmatprep.subr.bf16.mxu0 0
      %1393 = vmatpush1.bf16.msra.mxu0 0
      %1394 = vmatprep.subr.bf16.mxu0 0
      %1395 = vmatpush1.bf16.msra.mxu0 0
      %1396 = vmatprep.subr.bf16.mxu0 0
      %1397 = vmatpush1.bf16.msra.mxu0 0
      %1398 = vmatprep.subr.bf16.mxu0 0
      %1399 = vmatpush1.bf16.msra.mxu0 0
      %1400 = vmatprep.subr.bf16.mxu0 0
      %1401 = vmatpush1.bf16.msra.mxu0 0
      %1402 = vmatprep.subr.bf16.mxu0 0
      %1403 = vmatpush1.bf16.msra.mxu0 0
      %1404 = vmatprep.subr.bf16.mxu0 0
      %1405 = vmatpush1.bf16.msra.mxu0 0
      %1406 = vmatprep.subr.bf16.mxu0 0
      %1407 = vmatpush1.bf16.msra.mxu0 0
      %1408 = vmatprep.subr.bf16.mxu0 0
      %1409 = vmatpush1.bf16.msra.mxu0 0
      %1410 = vmatprep.subr.bf16.mxu0 0
      %1411 = vmatpush1.bf16.msra.mxu0 0
      %1412 = vmatprep.subr.bf16.mxu0 0
      %1413 = vmatpush1.bf16.msra.mxu0 0
      %1414 = vmatprep.subr.bf16.mxu0 0
      %1415 = vmatpush1.bf16.msra.mxu0 0
      %1416 = vmatprep.subr.bf16.mxu0 0
      %1417 = vmatpush1.bf16.msra.mxu0 0
      %1418 = vmatprep.subr.bf16.mxu0 0
      %1419 = vmatpush1.bf16.msra.mxu0 0
      %1420 = vmatprep.subr.bf16.mxu0 0
      %1421 = vmatpush1.bf16.msra.mxu0 0
      %1422 = vmatprep.mubr.bf16.mxu0 0
      %1423 = vmatmul.mubr.bf16.gmra.mrb[0].mxu0 %v1385
      %v1424 = vpop.f32.mrb[0].mxu0
      %v1425 = vadd.f32 0.0, %v1424
      %v1426 = vpop.f32.mrb[0].mxu0
      %v1427 = vpop.f32.mrb[0].mxu0
      %v1428 = vpop.f32.mrb[0].mxu0
      %1429 = vdwg.mxu0
      %v1430 = vcombine.high %v1379, 0.0
      %v1432 = vunpack.c.l.s4 1983009808
      %v1433 = vunpack.c.0.s8 %v1432
      %v1434 = vlaneseq
      %v1435 = vshrl.u32 %v1434, 7
      %v1436 = vsub.s32 %v1433, %v1435
      %v1437 = vrot.slane %v1379, %v1436
      %v1439 = vunpack.c.l.s4 1983009808
      %v1440 = vunpack.c.0.s8 %v1439
      %v1441 = vlaneseq
      %v1442 = vshrl.u32 %v1441, 7
      %v1443 = vsub.s32 %v1440, %v1442
      %v1444 = vrot.slane %v1430, %v1443
      %v1445 = vcombine.high %v1425, 0.0
      %v1447 = vunpack.c.l.s4 1983009808
      %v1448 = vunpack.c.0.s8 %v1447
      %v1449 = vlaneseq
      %v1450 = vshrl.u32 %v1449, 7
      %v1451 = vsub.s32 %v1448, %v1450
      %v1452 = vrot.slane %v1425, %v1451
      %v1454 = vunpack.c.l.s4 1983009808
      %v1455 = vunpack.c.0.s8 %v1454
      %v1456 = vlaneseq
      %v1457 = vshrl.u32 %v1456, 7
      %v1458 = vsub.s32 %v1455, %v1457
      %v1459 = vrot.slane %v1445, %v1458
      %v1460 = vcombine.low %v1437, %v1452
      %v1461 = vcombine.high %v1437, %v1452
      %v1463 = vunpack.c.l.s4 1934713408
      %v1464 = vunpack.c.0.s8 %v1463
      %v1465 = vlaneseq
      %v1466 = vshrl.u32 %v1465, 7
      %v1467 = vsub.s32 %v1464, %v1466
      %v1468 = vrot.slane %v1460, %v1467
      %v1470 = vunpack.c.l.s4 1934713408
      %v1471 = vunpack.c.0.s8 %v1470
      %v1472 = vlaneseq
      %v1473 = vshrl.u32 %v1472, 7
      %v1474 = vsub.s32 %v1471, %v1473
      %v1475 = vrot.slane %v1461, %v1474
      %v1476 = vcombine.low %v1444, %v1459
      %v1477 = vcombine.high %v1444, %v1459
      %v1479 = vunpack.c.l.s4 1934713408
      %v1480 = vunpack.c.0.s8 %v1479
      %v1481 = vlaneseq
      %v1482 = vshrl.u32 %v1481, 7
      %v1483 = vsub.s32 %v1480, %v1482
      %v1484 = vrot.slane %v1476, %v1483
      %v1486 = vunpack.c.l.s4 1934713408
      %v1487 = vunpack.c.0.s8 %v1486
      %v1488 = vlaneseq
      %v1489 = vshrl.u32 %v1488, 7
      %v1490 = vsub.s32 %v1487, %v1489
      %v1491 = vrot.slane %v1477, %v1490
      %v1492 = vcombine.high %v1468, 0.0
      %v1493 = vcombine.high %v1475, 0.0
      %v1494 = vcombine.high %v1484, 0.0
      %v1495 = vcombine.high %v1491, 0.0
      %v1496 = vcombine.low %v1468, %v1475
      %v1498 = vunpack.c.l.s4 1983009808
      %v1499 = vunpack.c.0.s8 %v1498
      %v1500 = vlaneseq
      %v1501 = vshrl.u32 %v1500, 7
      %v1502 = vsub.s32 %v1499, %v1501
      %v1503 = vrot.slane %v1496, %v1502
      %v1504 = vcombine.low %v1492, %v1493
      %v1506 = vunpack.c.l.s4 1983009808
      %v1507 = vunpack.c.0.s8 %v1506
      %v1508 = vlaneseq
      %v1509 = vshrl.u32 %v1508, 7
      %v1510 = vsub.s32 %v1507, %v1509
      %v1511 = vrot.slane %v1504, %v1510
      %v1512 = vcombine.low %v1484, %v1491
      %v1514 = vunpack.c.l.s4 1983009808
      %v1515 = vunpack.c.0.s8 %v1514
      %v1516 = vlaneseq
      %v1517 = vshrl.u32 %v1516, 7
      %v1518 = vsub.s32 %v1515, %v1517
      %v1519 = vrot.slane %v1512, %v1518
      %v1520 = vcombine.low %v1494, %v1495
      %v1522 = vunpack.c.l.s4 1983009808
      %v1523 = vunpack.c.0.s8 %v1522
      %v1524 = vlaneseq
      %v1525 = vshrl.u32 %v1524, 7
      %v1526 = vsub.s32 %v1523, %v1525
      %v1527 = vrot.slane %v1520, %v1526
      %v1528 = vcombine.low %v1503, %v1511
      %v1530 = vunpack.c.l.s4 1934713408
      %v1531 = vunpack.c.0.s8 %v1530
      %v1532 = vlaneseq
      %v1533 = vshrl.u32 %v1532, 7
      %v1534 = vsub.s32 %v1531, %v1533
      %v1535 = vrot.slane %v1528, %v1534
      %v1536 = vcombine.low %v1519, %v1527
      %v1538 = vunpack.c.l.s4 1934713408
      %v1539 = vunpack.c.0.s8 %v1538
      %v1540 = vlaneseq
      %v1541 = vshrl.u32 %v1540, 7
      %v1542 = vsub.s32 %v1539, %v1541
      %v1543 = vrot.slane %v1536, %v1542
      %v1544 = vcombine.low %v1535, %v1543
      %v1545 = vcombine.high %v1535, %v1543
      %1547 = vrot.lane.b32.xlu0 %v1545, 16
      %v1548 = vpop.permute.xlu0 %1547
      %v1550 = vsel %vm1219, %v1544, %v1548
      %v1551 = vpack.c.bf16 %v1550, %v1550
      %v1552 = vld [vmem:[%s699] sm:$0xf]
      %v1553 = vld [vmem:[%s699 + $0x4] sm:$0xf]
      %v1554 = vld [vmem:[%s699 + $0x8] sm:$0xf]
      %v1555 = vld [vmem:[%s699 + $0xc] sm:$0xf]
      %v1556 = vld [vmem:[%s702] sm:$0x1]
      %v1558 = vlaneseq
      %v1559 = vshrl.u32 %v1558, 7
      %v1560 = vsub.s32 0, %v1559
      %v1561 = vrot.slane %v1556, %v1560
      %v1567 = vunpack.c.l.b16 %v1552
      %v1568 = vunpack.c.l.b16 %v1553
      %v1569 = vunpack.c.l.b16 %v1554
      %v1570 = vunpack.c.l.b16 %v1555
      %v1571 = vpack.c.b16 %v1568, %v1567
      %v1572 = vpack.c.b16 %v1570, %v1569
      %v1576 = vsel %vm798, %v1551, 0
      %1578 = vmatprep.subr.bf16.mxu0 0
      %1579 = vmatpush1.bf16.msra.mxu0 %v1571
      %1580 = vmatprep.subr.bf16.mxu0 0
      %1581 = vmatpush1.bf16.msra.mxu0 %v1572
      %1582 = vmatprep.subr.bf16.mxu0 0
      %1583 = vmatpush1.bf16.msra.mxu0 0
      %1584 = vmatprep.subr.bf16.mxu0 0
      %1585 = vmatpush1.bf16.msra.mxu0 0
      %1586 = vmatprep.subr.bf16.mxu0 0
      %1587 = vmatpush1.bf16.msra.mxu0 0
      %1588 = vmatprep.subr.bf16.mxu0 0
      %1589 = vmatpush1.bf16.msra.mxu0 0
      %1590 = vmatprep.subr.bf16.mxu0 0
      %1591 = vmatpush1.bf16.msra.mxu0 0
      %1592 = vmatprep.subr.bf16.mxu0 0
      %1593 = vmatpush1.bf16.msra.mxu0 0
      %1594 = vmatprep.subr.bf16.mxu0 0
      %1595 = vmatpush1.bf16.msra.mxu0 0
      %1596 = vmatprep.subr.bf16.mxu0 0
      %1597 = vmatpush1.bf16.msra.mxu0 0
      %1598 = vmatprep.subr.bf16.mxu0 0
      %1599 = vmatpush1.bf16.msra.mxu0 0
      %1600 = vmatprep.subr.bf16.mxu0 0
      %1601 = vmatpush1.bf16.msra.mxu0 0
      %1602 = vmatprep.subr.bf16.mxu0 0
      %1603 = vmatpush1.bf16.msra.mxu0 0
      %1604 = vmatprep.subr.bf16.mxu0 0
      %1605 = vmatpush1.bf16.msra.mxu0 0
      %1606 = vmatprep.subr.bf16.mxu0 0
      %1607 = vmatpush1.bf16.msra.mxu0 0
      %1608 = vmatprep.subr.bf16.mxu0 0
      %1609 = vmatpush1.bf16.msra.mxu0 0
      %1610 = vmatprep.mubr.bf16.mxu0 0
      %1611 = vmatmul.mubr.bf16.gmra.mrb[0].mxu0 %v1576
      %v1612 = vpop.f32.mrb[0].mxu0
      %v1613 = vadd.f32 %v1561, %v1612
      %v1614 = vpop.f32.mrb[0].mxu0
      %v1615 = vpop.f32.mrb[0].mxu0
      %v1616 = vpop.f32.mrb[0].mxu0
      %1617 = vdwg.mxu0
      %v1618 = vadd.f32 %v1613, %v773
      %v1619 = vld [vmem:[%s705] sm:$0x1]
      %v1620 = vld [vmem:[%s708] sm:$0x1]
      %v1621 = vsel %vm798, %v1618, 0.0
      %1622 = vadd.xlane.f32.xlu0 %v1621
      %v1623 = vpop.xlane.xlu0 %1622
      %v1624 = vrcp.pop 32.0
      %v1625 = vmul.f32 %v1623, %v1624
      %v1626 = vsub.f32 %v1618, %v1625
      %v1627 = vmul.f32 %v1626, %v1626
      %v1628 = vsel %vm798, %v1627, 0.0
      %1629 = vadd.xlane.f32.xlu0 %v1628
      %v1630 = vpop.xlane.xlu0 %1629
      %v1631 = vmul.f32 %v1630, %v1624
      %v1632 = vadd.f32 %v1631, 1e-12
      %v1633 = vrsqrt.pop %v1632
      %v1634 = vmul.f32 %v1626, %v1633
      %v1636 = vlaneseq
      %v1637 = vshrl.u32 %v1636, 7
      %v1638 = vsub.s32 0, %v1637
      %v1639 = vrot.slane %v1619, %v1638
      %v1641 = vmul.f32 %v1634, %v1639
      %v1643 = vlaneseq
      %v1644 = vshrl.u32 %v1643, 7
      %v1645 = vsub.s32 0, %v1644
      %v1646 = vrot.slane %v1620, %v1645
      %v1648 = vadd.f32 %v1641, %v1646
      %v1649 = vpack.c.bf16 %v1648, %v1648
      %v1650 = vld [vmem:[%s713] sm:$0xf]
      %v1651 = vld [vmem:[%s713 + $0x4] sm:$0xf]
      %v1652 = vld [vmem:[%s713 + $0x8] sm:$0xf]
      %v1653 = vld [vmem:[%s713 + $0xc] sm:$0xf]
      %v1654 = vld [vmem:[%s716] sm:$0x1]
      %v1656 = vlaneseq
      %v1657 = vshrl.u32 %v1656, 7
      %v1658 = vsub.s32 0, %v1657
      %v1659 = vrot.slane %v1654, %v1658
      %v1665 = vunpack.c.l.b16 %v1650
      %v1666 = vunpack.c.l.b16 %v1651
      %v1667 = vunpack.c.l.b16 %v1652
      %v1668 = vunpack.c.l.b16 %v1653
      %v1669 = vpack.c.b16 %v1666, %v1665
      %v1670 = vpack.c.b16 %v1668, %v1667
      %v1674 = vsel %vm798, %v1649, 0
      %1676 = vmatprep.subr.bf16.mxu0 0
      %1677 = vmatpush1.bf16.msra.mxu0 %v1669
      %1678 = vmatprep.subr.bf16.mxu0 0
      %1679 = vmatpush1.bf16.msra.mxu0 %v1670
      %1680 = vmatprep.subr.bf16.mxu0 0
      %1681 = vmatpush1.bf16.msra.mxu0 0
      %1682 = vmatprep.subr.bf16.mxu0 0
      %1683 = vmatpush1.bf16.msra.mxu0 0
      %1684 = vmatprep.subr.bf16.mxu0 0
      %1685 = vmatpush1.bf16.msra.mxu0 0
      %1686 = vmatprep.subr.bf16.mxu0 0
      %1687 = vmatpush1.bf16.msra.mxu0 0
      %1688 = vmatprep.subr.bf16.mxu0 0
      %1689 = vmatpush1.bf16.msra.mxu0 0
      %1690 = vmatprep.subr.bf16.mxu0 0
      %1691 = vmatpush1.bf16.msra.mxu0 0
      %1692 = vmatprep.subr.bf16.mxu0 0
      %1693 = vmatpush1.bf16.msra.mxu0 0
      %1694 = vmatprep.subr.bf16.mxu0 0
      %1695 = vmatpush1.bf16.msra.mxu0 0
      %1696 = vmatprep.subr.bf16.mxu0 0
      %1697 = vmatpush1.bf16.msra.mxu0 0
      %1698 = vmatprep.subr.bf16.mxu0 0
      %1699 = vmatpush1.bf16.msra.mxu0 0
      %1700 = vmatprep.subr.bf16.mxu0 0
      %1701 = vmatpush1.bf16.msra.mxu0 0
      %1702 = vmatprep.subr.bf16.mxu0 0
      %1703 = vmatpush1.bf16.msra.mxu0 0
      %1704 = vmatprep.subr.bf16.mxu0 0
      %1705 = vmatpush1.bf16.msra.mxu0 0
      %1706 = vmatprep.subr.bf16.mxu0 0
      %1707 = vmatpush1.bf16.msra.mxu0 0
      %1708 = vmatprep.mubr.bf16.mxu0 0
      %1709 = vmatmul.mubr.bf16.gmra.mrb[0].mxu0 %v1674
      %v1710 = vpop.f32.mrb[0].mxu0
      %v1711 = vadd.f32 %v1659, %v1710
      %v1712 = vpop.f32.mrb[0].mxu0
      %v1713 = vpop.f32.mrb[0].mxu0
      %v1714 = vpop.f32.mrb[0].mxu0
      %1715 = vdwg.mxu0
      %v1716 = vmul.f32 %v1711, 0.5
      %v1717 = vmul.f32 %v1711, 0.044715
      %v1718 = vmul.f32 %v1717, %v1711
      %v1719 = vmul.f32 %v1718, %v1711
      %v1720 = vadd.f32 %v1711, %v1719
      %v1721 = vmul.f32 %v1720, 0.7978846
      %v1722 = vtanh.pop %v1721
      %v1723 = vadd.f32 %v1722, 1.0
      %v1724 = vmul.f32 %v1716, %v1723
      %v1725 = vpack.c.bf16 %v1724, %v1724
      %v1726 = vld [vmem:[%s721] sm:$0xf]
      %v1727 = vld [vmem:[%s721 + $0x4] sm:$0xf]
      %v1728 = vld [vmem:[%s721 + $0x8] sm:$0xf]
      %v1729 = vld [vmem:[%s721 + $0xc] sm:$0xf]
      %v1730 = vld [vmem:[%s721 + $0x10] sm:$0xf]
      %v1731 = vld [vmem:[%s721 + $0x14] sm:$0xf]
      %v1732 = vld [vmem:[%s721 + $0x18] sm:$0xf]
      %v1733 = vld [vmem:[%s721 + $0x1c] sm:$0xf]
      %v1734 = vld [vmem:[%s724] sm:$0x1]
      %v1736 = vlaneseq
      %v1737 = vshrl.u32 %v1736, 7
      %v1738 = vsub.s32 0, %v1737
      %v1739 = vrot.slane %v1734, %v1738
      %v1749 = vunpack.c.l.b16 %v1726
      %v1750 = vunpack.c.l.b16 %v1727
      %v1751 = vunpack.c.l.b16 %v1728
      %v1752 = vunpack.c.l.b16 %v1729
      %v1753 = vunpack.c.l.b16 %v1730
      %v1754 = vunpack.c.l.b16 %v1731
      %v1755 = vunpack.c.l.b16 %v1732
      %v1756 = vunpack.c.l.b16 %v1733
      %v1757 = vpack.c.b16 %v1750, %v1749
      %v1758 = vpack.c.b16 %v1752, %v1751
      %v1759 = vpack.c.b16 %v1754, %v1753
      %v1760 = vpack.c.b16 %v1756, %v1755
      %vm1765 = vcmask 523264
      %v1767 = vsel %vm1765, %v1725, 0
      %1769 = vmatprep.subr.bf16.mxu0 0
      %1770 = vmatpush1.bf16.msra.mxu0 %v1757
      %1771 = vmatprep.subr.bf16.mxu0 0
      %1772 = vmatpush1.bf16.msra.mxu0 %v1758
      %1773 = vmatprep.subr.bf16.mxu0 0
      %1774 = vmatpush1.bf16.msra.mxu0 %v1759
      %1775 = vmatprep.subr.bf16.mxu0 0
      %1776 = vmatpush1.bf16.msra.mxu0 %v1760
      %1777 = vmatprep.subr.bf16.mxu0 0
      %1778 = vmatpush1.bf16.msra.mxu0 0
      %1779 = vmatprep.subr.bf16.mxu0 0
      %1780 = vmatpush1.bf16.msra.mxu0 0
      %1781 = vmatprep.subr.bf16.mxu0 0
      %1782 = vmatpush1.bf16.msra.mxu0 0
      %1783 = vmatprep.subr.bf16.mxu0 0
      %1784 = vmatpush1.bf16.msra.mxu0 0
      %1785 = vmatprep.subr.bf16.mxu0 0
      %1786 = vmatpush1.bf16.msra.mxu0 0
      %1787 = vmatprep.subr.bf16.mxu0 0
      %1788 = vmatpush1.bf16.msra.mxu0 0
      %1789 = vmatprep.subr.bf16.mxu0 0
      %1790 = vmatpush1.bf16.msra.mxu0 0
      %1791 = vmatprep.subr.bf16.mxu0 0
      %1792 = vmatpush1.bf16.msra.mxu0 0
      %1793 = vmatprep.subr.bf16.mxu0 0
      %1794 = vmatpush1.bf16.msra.mxu0 0
      %1795 = vmatprep.subr.bf16.mxu0 0
      %1796 = vmatpush1.bf16.msra.mxu0 0
      %1797 = vmatprep.subr.bf16.mxu0 0
      %1798 = vmatpush1.bf16.msra.mxu0 0
      %1799 = vmatprep.subr.bf16.mxu0 0
      %1800 = vmatpush1.bf16.msra.mxu0 0
      %1801 = vmatprep.mubr.bf16.mxu0 0
      %1802 = vmatmul.mubr.bf16.gmra.mrb[0].mxu0 %v1767
      %v1803 = vpop.f32.mrb[0].mxu0
      %v1804 = vadd.f32 %v1739, %v1803
      %v1805 = vpop.f32.mrb[0].mxu0
      %v1806 = vpop.f32.mrb[0].mxu0
      %v1807 = vpop.f32.mrb[0].mxu0
      %1808 = vdwg.mxu0
      %v1809 = vadd.f32 %v1804, %v1648
      %v1810 = vld [vmem:[%s727] sm:$0x1]
      %v1811 = vld [vmem:[%s730] sm:$0x1]
      %v1812 = vsel %vm798, %v1809, 0.0
      %1813 = vadd.xlane.f32.xlu0 %v1812
      %v1814 = vpop.xlane.xlu0 %1813
      %v1815 = vmul.f32 %v1814, %v1624
      %v1816 = vsub.f32 %v1809, %v1815
      %v1817 = vmul.f32 %v1816, %v1816
      %v1818 = vsel %vm798, %v1817, 0.0
      %1819 = vadd.xlane.f32.xlu0 %v1818
      %v1820 = vpop.xlane.xlu0 %1819
      %v1821 = vmul.f32 %v1820, %v1624
      %v1822 = vadd.f32 %v1821, 1e-12
      %v1823 = vrsqrt.pop %v1822
      %v1824 = vmul.f32 %v1816, %v1823
      %v1826 = vlaneseq
      %v1827 = vshrl.u32 %v1826, 7
      %v1828 = vsub.s32 0, %v1827
      %v1829 = vrot.slane %v1810, %v1828
      %v1831 = vmul.f32 %v1824, %v1829
      %v1833 = vlaneseq
      %v1834 = vshrl.u32 %v1833, 7
      %v1835 = vsub.s32 0, %v1834
      %v1836 = vrot.slane %v1811, %v1835
      %v1838 = vadd.f32 %v1831, %v1836
      %1839 = vst.msk [vmem:[#allocation2] sm:$0xff] %vm798, %v1838
      %p1840 = scmp.eq.s32.totalorder %s32, 1
      // Predicated region
      $region89: #{_lambda_.2} parent=83 // pred_check
        %p1841 = pneg %p1840
      $region90: #{_lambda_.2} parent=83 // pred_check_branch
        %1843 = sbr.rel (%p1841) target = $region92
      $region91: #{_lambda_.2} parent=83 // pred_region
        %1844 = vst.msk [vmem:[%s734] sm:$0xff] %vm798, %v1838
      $region92: #{_lambda_.2} parent=83 // pred_fallthru
        _
      %p1845 = scmp.lt.s32.totalorder %s31, 1
      %s1846 = scalar_select %p1845, %s31, 1
      %s1847 = smul.addr %s1846, 8
      %s1848 = scalar_lea.vmem %s16, %s1847
      // Predicated region
      $region93: #{_lambda_.2} parent=83 // pred_check
        %p1849 = pneg %p463
      $region94: #{_lambda_.2} parent=83 // pred_check_branch
        %1851 = sbr.rel (%p1849) target = $region96
      $region95: #{_lambda_.2} parent=83 // pred_region
        _
      $region96: #{_lambda_.2} parent=83 // pred_fallthru
        _
    $region84: #{_lambda_.2} parent=5 // pred_fallthru
      _
    %p1852 = scmp.le.s32.totalorder 2, %s22
    // Predicated region
    $region97: #{_lambda_.2} parent=5 // pred_check
      %p1853 = pneg %p1852
    $region98: #{_lambda_.2} parent=5 // pred_check_branch
      %1855 = sbr.rel (%p1853) target = $region100
    $region99: #{_lambda_.2} parent=5 // pred_region
      %s1856 = ssub.s32 %s22, 2
      // Predicated region
      $region101: #{_lambda_.2} parent=99 // pred_check
        %p1857 = pneg %p469
      $region102: #{_lambda_.2} parent=99 // pred_check_branch
        %1859 = sbr.rel (%p1857) target = $region104
      $region103: #{_lambda_.2} parent=99 // pred_region
        %p1860 = scmp.lt.s32.totalorder %s33, 1
        %s1861 = scalar_select %p1860, %s33, 1
        %s1862 = smul.addr %s1861, 8
        %s1863 = scalar_lea.vmem %s16, %s1862
      $region104: #{_lambda_.2} parent=99 // pred_fallthru
        _
    $region100: #{_lambda_.2} parent=5 // pred_fallthru
      _
  $region6: #{_lambda_.2} parent=0 // loop_footer
    %s26 = sadd.s32 1, %s22
  $region7: #{_lambda_.2} parent=0 // loop_footer_branch
    %21 = sbr.rel target = $region3
  $region8: #{_lambda_.2} parent=0 // loop_exit
    _

</llo_original>
